<compile_context>
chip_gen: v7x
topology: tpu7x:2x2x1
jax: 0.10.0
libtpu: 0.0.40
codegen_flags: <defaults>
</compile_context>

<pallas_src>
import math
import functools

import jax
import jax.numpy as jnp
from jax.experimental import pallas as pl
from jax.experimental.pallas import tpu as pltpu


def _round_up(x, m):
    return ((x + m - 1) // m) * m


def _tile_bytes(rows, cols, itemsize):
    """Bytes of a (rows, cols) tile padded to the (8, 128) vreg tiling."""
    return _round_up(max(rows, 1), 8) * _round_up(max(cols, 1), 128) * itemsize


def _vmem_limit_bytes(est_bytes):
    """Scoped-VMEM limit: generous on 128-MiB parts, conservative on v7x."""
    phys = 64 << 20
    try:
        info = pltpu.get_tpu_info()
        phys = int(getattr(info, "vmem_capacity_bytes", phys)) or phys
    except Exception:
        pass
    cap = (100 << 20) if phys >= (96 << 20) else (44 << 20)
    return int(min(cap, max(2 * est_bytes, 32 << 20)))


def _pick_heads_per_block(num_heads, d_k, l_keys, tq, mxu_bytes, budget_bytes):
    """Largest head-block keeping the context slab lane-dense and the
    double-buffered Q/K/V blocks inside a VMEM budget."""
    def lane_dense(hb):
        return hb == num_heads or (hb * d_k) % 128 == 0

    def blk_bytes(hb):
        kv = 2 * hb * _tile_bytes(l_keys, d_k, mxu_bytes)
        q = hb * _tile_bytes(tq, d_k, mxu_bytes)
        return 2 * (kv + q)                       # double-buffered

    divisors = [h for h in range(num_heads, 0, -1) if num_heads % h == 0]
    for hb in divisors:
        if lane_dense(hb) and blk_bytes(hb) <= budget_bytes:
            return hb
    for hb in reversed(divisors):                 # smallest lane-dense fallback
        if lane_dense(hb):
            return hb
    return num_heads


# --------------------------------------------------------------------------
# Kernels
# --------------------------------------------------------------------------
def _mha_full_kernel(q_ref, k_ref, v_ref, ctx_ref, *attn_refs,
                     heads, softmax_dtype, mxu_dtype):
    """One grid step = (batch, head-block, q-block); full-length keys resident.

    q_ref: (1, Hb, TQ, d_k)   k_ref / v_ref: (1, Hb, Lk, d_k)
    ctx_ref: (1, TQ, Hb*d_k)  attn_refs[0] (optional): (Hb, 1, TQ, Lk)
    """
    parts = []
    for h in range(heads):
        q = q_ref[0, h]                                   # pre-scaled, mxu dtype
        k = k_ref[0, h]
        v = v_ref[0, h]
        # scores (TQ, Lk): contract d_k of both operands (no explicit transpose)
        s = jax.lax.dot_general(q, k, (((1,), (1,)), ((), ())),
                                preferred_element_type=jnp.float32)
        m = jnp.max(s, axis=-1, keepdims=True)
        e = jnp.exp((s - m).astype(softmax_dtype))
        denom = jnp.sum(e.astype(jnp.float32), axis=-1, keepdims=True)
        if attn_refs:
            # exact divide for the materialized weights (matches torch softmax)
            p = e.astype(jnp.float32) / denom
            attn_refs[0][h, 0] = p.astype(attn_refs[0].dtype)
            ctx = jnp.dot(p.astype(mxu_dtype), v,
                          preferred_element_type=jnp.float32)
        else:
            # deferred normalization: scale TQ*d_k elements, not TQ*Lk
            ctx = jnp.dot(e.astype(mxu_dtype), v,
                          preferred_element_type=jnp.float32)
            ctx = ctx * pl.reciprocal(denom, approx=True)
        parts.append(ctx)
    slab = parts[0] if heads == 1 else jnp.concatenate(parts, axis=-1)
    ctx_ref[0] = slab.astype(ctx_ref.dtype)               # lane-dense store


def _mha_flash_kernel(q_ref, k_ref, v_ref, ctx_ref, m_sc, l_sc, acc_sc,
                      *, heads, softmax_dtype, mxu_dtype):
    """Online-softmax over a tiled key axis (grid axis 3, 'arbitrary').

    q_ref: (1, Hb, TQ, d_k)   k_ref / v_ref: (1, Hb, TK, d_k)
    ctx_ref: (1, TQ, Hb*d_k)  scratch: m/l (Hb, TQ, 1) f32, acc (Hb, TQ, d_k) f32
    """
    kv = pl.program_id(3)

    @pl.when(kv == 0)
    def _():
        m_sc[...] = jnp.full(m_sc.shape, -jnp.inf, dtype=m_sc.dtype)
        l_sc[...] = jnp.zeros(l_sc.shape, dtype=l_sc.dtype)
        acc_sc[...] = jnp.zeros(acc_sc.shape, dtype=acc_sc.dtype)

    for h in range(heads):
        q = q_ref[0, h]
        k = k_ref[0, h]
        v = v_ref[0, h]
        s = jax.lax.dot_general(q, k, (((1,), (1,)), ((), ())),
                                preferred_element_type=jnp.float32)   # (TQ, TK)
        m_prev = m_sc[h]
        m_new = jnp.maximum(m_prev, jnp.max(s, axis=-1, keepdims=True))
        alpha = jnp.exp(m_prev - m_new)
        e = jnp.exp((s - m_new).astype(softmax_dtype)).astype(jnp.float32)
        l_sc[h] = alpha * l_sc[h] + jnp.sum(e, axis=-1, keepdims=True)
        acc_sc[h] = alpha * acc_sc[h] + jnp.dot(
            e.astype(mxu_dtype), v, preferred_element_type=jnp.float32)
        m_sc[h] = m_new

    @pl.when(kv == pl.num_programs(3) - 1)
    def _():
        parts = []
        for h in range(heads):
            parts.append(acc_sc[h] * pl.reciprocal(l_sc[h], approx=True))
        slab = parts[0] if heads == 1 else jnp.concatenate(parts, axis=-1)
        ctx_ref[0] = slab.astype(ctx_ref.dtype)


# --------------------------------------------------------------------------
# Wrapper
# --------------------------------------------------------------------------
def multi_head_attention(query, key, value, params, num_heads, *,
                         block_q=256, block_kv=512, heads_per_block=None,
                         mxu_dtype=jnp.bfloat16, softmax_dtype=jnp.float32,
                         attn_dtype=jnp.float32, return_attn=False):
    """query/key/value: (L, B, D) seq-first, like the PyTorch module.

    Returns (output (Lq, B, D), attn (H, B, Lq, Lk) or None).
    """
    # TODO(synk): the optional boolean `mask` (masked_fill with -inf) is not
    # wired in; this implements the mask=None path only.
    Lq_in, B, D = query.shape
    Lk = key.shape[0]
    assert value.shape[0] == Lk
    assert D % num_heads == 0
    d_k = D // num_heads
    assert block_q % 8 == 0 and block_kv % 8 == 0

    wq, bq, wk, bk, wv, bv, wo, bo = params
    scale = 1.0 / math.sqrt(d_k)

    # ---- projections + head split as single einsums (no relayout passes);
    #      1/sqrt(d_k) folded into the Q projection; pre-cast to MXU dtype.
    def split_heads(x, w, b):
        wh = w.reshape(num_heads, d_k, D)                     # torch: y = x W^T + b
        y = jnp.einsum('lbd,hkd->bhlk', x, wh)
        return (y + b.reshape(num_heads, 1, d_k)).astype(mxu_dtype)

    Qh = split_heads(query, wq * scale, bq * scale)           # (B, H, Lq, d_k)
    Kh = split_heads(key, wk, bk)                             # (B, H, Lk, d_k)
    Vh = split_heads(value, wv, bv)

    # ---- q tiling: pad the query axis so there is no full-L fallback
    TQ = max(8, min(block_q, _round_up(Lq_in, 8)))
    Lq = _round_up(Lq_in, TQ)
    if Lq != Lq_in:
        Qh = jnp.pad(Qh, ((0, 0), (0, 0), (0, Lq - Lq_in), (0, 0)))
    nq = Lq // TQ

    mxu_bytes = jnp.dtype(mxu_dtype).itemsize
    attn_bytes = jnp.dtype(attn_dtype).itemsize
    out_dtype = query.dtype
    out_bytes = jnp.dtype(out_dtype).itemsize

    # Flash (kv-tiled) only when no attn writeback and the key axis tiles evenly.
    # TODO(synk): ragged key lengths on the flash path would need key masking.
    use_flash = (not return_attn) and (Lk % block_kv == 0) and (Lk // block_kv > 1)
    l_keys_blk = block_kv if use_flash else Lk

    if heads_per_block is None:
        heads_per_block = _pick_heads_per_block(
            num_heads, d_k, l_keys_blk, TQ, mxu_bytes, budget_bytes=24 << 20)
    Hb = heads_per_block
    assert num_heads % Hb == 0
    assert Hb == num_heads or (Hb * d_k) % 128 == 0, (
        "heads_per_block must keep the context slab lane-dense")
    nhb = num_heads // Hb

    # ---- scoped-VMEM budget derived from the tiled working set
    q_blk = Hb * _tile_bytes(TQ, d_k, mxu_bytes)
    kv_blk = 2 * Hb * _tile_bytes(l_keys_blk, d_k, mxu_bytes)
    ctx_blk = _tile_bytes(TQ, Hb * d_k, out_bytes)
    attn_blk = Hb * _tile_bytes(TQ, Lk, attn_bytes) if return_attn else 0
    temps = 6 * _tile_bytes(TQ, l_keys_blk, 4)
    scratch = (Hb * (2 * _tile_bytes(TQ, 1, 4) + _tile_bytes(TQ, d_k, 4))
               if use_flash else 0)
    est = 2 * (q_blk + kv_blk + ctx_blk + attn_blk) + temps + scratch
    vmem_limit = _vmem_limit_bytes(est)

    kern_kwargs = dict(heads=Hb, softmax_dtype=softmax_dtype, mxu_dtype=mxu_dtype)

    if use_flash:
        nkv = Lk // block_kv
        grid = (B, nhb, nq, nkv)
        q_spec = pl.BlockSpec((1, Hb, TQ, d_k), lambda b, hb, qi, ki: (b, hb, qi, 0))
        kv_spec = pl.BlockSpec((1, Hb, block_kv, d_k),
                               lambda b, hb, qi, ki: (b, hb, ki, 0))
        ctx_spec = pl.BlockSpec((1, TQ, Hb * d_k), lambda b, hb, qi, ki: (b, qi, hb))
        ctx = pl.pallas_call(
            functools.partial(_mha_flash_kernel, **kern_kwargs),
            out_shape=jax.ShapeDtypeStruct((B, Lq, D), out_dtype),
            grid=grid,
            in_specs=[q_spec, kv_spec, kv_spec],
            out_specs=ctx_spec,
            scratch_shapes=[pltpu.VMEM((Hb, TQ, 1), jnp.float32),
                            pltpu.VMEM((Hb, TQ, 1), jnp.float32),
                            pltpu.VMEM((Hb, TQ, d_k), jnp.float32)],
            compiler_params=pltpu.CompilerParams(
                dimension_semantics=("parallel", "parallel", "parallel", "arbitrary"),
                vmem_limit_bytes=vmem_limit),
        )(Qh, Kh, Vh)
        attn = None
    else:
        grid = (B, nhb, nq)
        q_spec = pl.BlockSpec((1, Hb, TQ, d_k), lambda b, hb, qi: (b, hb, qi, 0))
        kv_spec = pl.BlockSpec((1, Hb, Lk, d_k), lambda b, hb, qi: (b, hb, 0, 0))
        ctx_spec = pl.BlockSpec((1, TQ, Hb * d_k), lambda b, hb, qi: (b, qi, hb))
        if return_attn:
            attn_spec = pl.BlockSpec((Hb, 1, TQ, Lk), lambda b, hb, qi: (hb, b, qi, 0))
            out_shapes = (jax.ShapeDtypeStruct((B, Lq, D), out_dtype),
                          jax.ShapeDtypeStruct((num_heads, B, Lq, Lk), attn_dtype))
            out_specs = (ctx_spec, attn_spec)
        else:
            out_shapes = jax.ShapeDtypeStruct((B, Lq, D), out_dtype)
            out_specs = ctx_spec
        res = pl.pallas_call(
            functools.partial(_mha_full_kernel, **kern_kwargs),
            out_shape=out_shapes,
            grid=grid,
            in_specs=[q_spec, kv_spec, kv_spec],
            out_specs=out_specs,
            compiler_params=pltpu.CompilerParams(
                dimension_semantics=("parallel", "parallel", "parallel"),
                vmem_limit_bytes=vmem_limit),
        )(Qh, Kh, Vh)
        if return_attn:
            ctx, attn = res
            attn = attn[:, :, :Lq_in, :]
        else:
            ctx, attn = res, None

    ctx = ctx[:, :Lq_in, :]                                   # drop query padding

    # ---- output projection straight from (B, L, D) back to seq-first (L, B, D)
    out = jnp.einsum('blk,ok->lbo', ctx, wo) + bo
    return out, attn


# --------------------------------------------------------------------------
# Pure-JAX reference (transcription of the PyTorch forward, mask=None)
# --------------------------------------------------------------------------
def _reference(query, key, value, params, num_heads):
    Lq, B, D = query.shape
    d_k = D // num_heads
    wq, bq, wk, bk, wv, bv, wo, bo = params

    def proj(x, w, b):
        Lx = x.shape[0]
        y = (x @ w.T + b).reshape(Lx, B, num_heads, d_k)
        return jnp.transpose(y, (2, 1, 0, 3))                 # torch .transpose(0, 2)

    Q = proj(query, wq, bq)
    K = proj(key, wk, bk)
    V = proj(value, wv, bv)
    scores = jnp.matmul(Q, jnp.swapaxes(K, -2, -1)) / math.sqrt(d_k)
    align = jax.nn.softmax(scores, axis=-1)                   # (H, B, Lq, Lk)
    x = jnp.matmul(align, V)
    x = jnp.transpose(x, (2, 1, 0, 3)).reshape(Lq, B, D)
    return x @ wo.T + bo, align


if __name__ == "__main__":
    D, H, B = 32, 4, 2                                        # model_dim, heads, batch
    root = jax.random.PRNGKey(0)
    ks = jax.random.split(root, 16)
    bound = 1.0 / math.sqrt(D)                                # nn.Linear default init

    def u(kk, shape):
        return jax.random.uniform(kk, shape, jnp.float32, -bound, bound)

    params = (u(ks[0], (D, D)), u(ks[1], (D,)),               # fc_q
              u(ks[2], (D, D)), u(ks[3], (D,)),               # fc_k
              u(ks[4], (D, D)), u(ks[5], (D,)),               # fc_v
              u(ks[6], (D, D)), u(ks[7], (D,)))               # fc_out

    # ---- config 1: L=16, full-length-keys kernel ----
    L = 16
    q = jax.random.normal(ks[8], (L, B, D), jnp.float32)
    k = jax.random.normal(ks[9], (L, B, D), jnp.float32)
    v = jax.random.normal(ks[10], (L, B, D), jnp.float32)
    ref_out, ref_attn = _reference(q, k, v, params, H)

    # (a) exact path: f32 MXU operands, attention weights materialized
    out, attn = multi_head_attention(q, k, v, params, H,
                                     mxu_dtype=jnp.float32, return_attn=True)
    out = jax.block_until_ready(out)
    attn = jax.block_until_ready(attn)
    assert out.shape == (L, B, D) and attn.shape == (H, B, L, L)
    assert jnp.allclose(out, ref_out, atol=1e-2, rtol=1e-2)
    assert jnp.allclose(attn, ref_attn, atol=1e-2, rtol=1e-2)

    # (b) tiled-q path (TQ=8 -> two q-blocks per head-block)
    out_t, attn_t = multi_head_attention(q, k, v, params, H, block_q=8,
                                         mxu_dtype=jnp.float32, return_attn=True)
    jax.block_until_ready(out_t)
    assert jnp.allclose(out_t, ref_out, atol=1e-2, rtol=1e-2)
    assert jnp.allclose(attn_t, ref_attn, atol=1e-2, rtol=1e-2)

    # (c) default perf path: bf16 MXU operands, no attn writeback, deferred norm
    out_p, attn_p = multi_head_attention(q, k, v, params, H)
    jax.block_until_ready(out_p)
    assert attn_p is None
    assert jnp.allclose(out_p, ref_out, atol=5e-2, rtol=5e-2)

    # (d) ragged L (query-padding path) + bf16 softmax elementwise math
    Lr = 12
    qr = jax.random.normal(ks[11], (Lr, B, D), jnp.float32)
    kr = jax.random.normal(ks[12], (Lr, B, D), jnp.float32)
    vr = jax.random.normal(ks[13], (Lr, B, D), jnp.float32)
    ref_out_r, ref_attn_r = _reference(qr, kr, vr, params, H)
    out_r, attn_r = multi_head_attention(qr, kr, vr, params, H,
                                         mxu_dtype=jnp.float32,
                                         softmax_dtype=jnp.bfloat16,
                                         return_attn=True)
    jax.block_until_ready(out_r)
    assert out_r.shape == (Lr, B, D) and attn_r.shape == (H, B, Lr, Lr)
    assert jnp.allclose(out_r, ref_out_r, atol=5e-2, rtol=5e-2)
    assert jnp.allclose(attn_r, ref_attn_r, atol=5e-2, rtol=5e-2)

    # (e) flash path: kv-tiled online softmax (L=256, TQ=TK=128)
    Lf = 256
    qf = jax.random.normal(ks[14], (Lf, B, D), jnp.float32)
    kf = jax.random.normal(ks[15], (Lf, B, D), jnp.float32)
    vf = qf * 0.5 + kf * 0.25
    ref_out_f, _ = _reference(qf, kf, vf, params, H)
    out_f, attn_f = multi_head_attention(qf, kf, vf, params, H,
                                         block_q=128, block_kv=128,
                                         mxu_dtype=jnp.float32,
                                         return_attn=False)
    jax.block_until_ready(out_f)
    assert attn_f is None
    assert jnp.allclose(out_f, ref_out_f, atol=1e-2, rtol=1e-2)

    print("KERNEL_OK")
</pallas_src>

<mosaic_0001>
module attributes {stable_mosaic.version = 11 : i64} {
  func.func @_mha_full_kernel(%arg0: i32, %arg1: i32, %arg2: i32, %arg3: memref<1x4x16x8xf32, #tpu.memory_space<vmem>>, %arg4: memref<1x4x16x8xf32, #tpu.memory_space<vmem>>, %arg5: memref<1x4x16x8xf32, #tpu.memory_space<vmem>>, %arg6: memref<1x16x32xf32, #tpu.memory_space<vmem>>, %arg7: memref<4x1x16x16xf32, #tpu.memory_space<vmem>>) attributes {dimension_semantics = [#tpu.dimension_semantics<parallel>, #tpu.dimension_semantics<parallel>, #tpu.dimension_semantics<parallel>], iteration_bounds = array<i64: 2, 1, 1>, scalar_prefetch = 0 : i64, scratch_operands = 0 : i64, tpu.core_type = #tpu.core_type<tc>, window_params = [{transform_indices = @transform_0, window_bounds = array<i64: 1, 4, 16, 8>}, {transform_indices = @transform_1, window_bounds = array<i64: 1, 4, 16, 8>}, {transform_indices = @transform_2, window_bounds = array<i64: 1, 4, 16, 8>}, {transform_indices = @transform_3, window_bounds = array<i64: 1, 16, 32>}, {transform_indices = @transform_4, window_bounds = array<i64: 4, 1, 16, 16>}]} {
    %c0 = arith.constant 0 : index
    %c0_0 = arith.constant 0 : index
    %c0_1 = arith.constant 0 : index
    %c0_2 = arith.constant 0 : index
    %0 = vector.load %arg3[%c0, %c0_0, %c0_1, %c0_2] : memref<1x4x16x8xf32, #tpu.memory_space<vmem>>, vector<1x1x16x8xf32>
    %1 = vector.shape_cast %0 : vector<1x1x16x8xf32> to vector<16x8xf32>
    %c0_3 = arith.constant 0 : index
    %c0_4 = arith.constant 0 : index
    %c0_5 = arith.constant 0 : index
    %c0_6 = arith.constant 0 : index
    %2 = vector.load %arg4[%c0_3, %c0_4, %c0_5, %c0_6] : memref<1x4x16x8xf32, #tpu.memory_space<vmem>>, vector<1x1x16x8xf32>
    %3 = vector.shape_cast %2 : vector<1x1x16x8xf32> to vector<16x8xf32>
    %c0_7 = arith.constant 0 : index
    %c0_8 = arith.constant 0 : index
    %c0_9 = arith.constant 0 : index
    %c0_10 = arith.constant 0 : index
    %4 = vector.load %arg5[%c0_7, %c0_8, %c0_9, %c0_10] : memref<1x4x16x8xf32, #tpu.memory_space<vmem>>, vector<1x1x16x8xf32>
    %5 = vector.shape_cast %4 : vector<1x1x16x8xf32> to vector<16x8xf32>
    %cst = arith.constant dense<0.000000e+00> : vector<16x16xf32>
    %6 = tpu.matmul %1, %3, %cst {dimension_numbers = #tpu.dot_dimension_numbers<[1], [1], [0], [0], [0, 0, 1, 0], [], []>} : vector<16x8xf32>, vector<16x8xf32>, vector<16x16xf32> -> vector<16x16xf32>
    %cst_11 = arith.constant dense<0xFF800000> : vector<16xf32>
    %7 = vector.multi_reduction <maximumf>, %6, %cst_11 [1] : vector<16x16xf32> to vector<16xf32>
    %8 = vector.shape_cast %7 : vector<16xf32> to vector<16x1xf32>
    %9 = vector.broadcast %8 : vector<16x1xf32> to vector<16x16xf32>
    %10 = arith.subf %6, %9 : vector<16x16xf32>
    %11 = math.exp %10 : vector<16x16xf32>
    %cst_12 = arith.constant dense<0.000000e+00> : vector<16xf32>
    %12 = vector.multi_reduction <add>, %11, %cst_12 [1] : vector<16x16xf32> to vector<16xf32>
    %13 = vector.shape_cast %12 : vector<16xf32> to vector<16x1xf32>
    %14 = vector.broadcast %13 : vector<16x1xf32> to vector<16x16xf32>
    %15 = arith.divf %11, %14 : vector<16x16xf32>
    %c0_13 = arith.constant 0 : index
    %c0_14 = arith.constant 0 : index
    %c0_15 = arith.constant 0 : index
    %c0_16 = arith.constant 0 : index
    %16 = vector.load %arg7[%c0_13, %c0_14, %c0_15, %c0_16] : memref<4x1x16x16xf32, #tpu.memory_space<vmem>>, vector<1x1x16x16xf32>
    %17 = vector.shape_cast %16 : vector<1x1x16x16xf32> to vector<16x16xf32>
    %18 = vector.shape_cast %15 : vector<16x16xf32> to vector<1x1x16x16xf32>
    tpu.vector_store %arg7[%c0_13, %c0_14, %c0_15, %c0_16], %18 {strides = array<i32>} : memref<4x1x16x16xf32, #tpu.memory_space<vmem>>, vector<1x1x16x16xf32>,
    %cst_17 = arith.constant dense<0.000000e+00> : vector<16x8xf32>
    %19 = tpu.matmul %15, %5, %cst_17 {dimension_numbers = #tpu.dot_dimension_numbers<[1], [0], [0], [1], [0, 0, 1, 1], [], []>} : vector<16x16xf32>, vector<16x8xf32>, vector<16x8xf32> -> vector<16x8xf32>
    %c0_18 = arith.constant 0 : index
    %c1 = arith.constant 1 : index
    %c0_19 = arith.constant 0 : index
    %c0_20 = arith.constant 0 : index
    %20 = vector.load %arg3[%c0_18, %c1, %c0_19, %c0_20] : memref<1x4x16x8xf32, #tpu.memory_space<vmem>>, vector<1x1x16x8xf32>
    %21 = vector.shape_cast %20 : vector<1x1x16x8xf32> to vector<16x8xf32>
    %c0_21 = arith.constant 0 : index
    %c1_22 = arith.constant 1 : index
    %c0_23 = arith.constant 0 : index
    %c0_24 = arith.constant 0 : index
    %22 = vector.load %arg4[%c0_21, %c1_22, %c0_23, %c0_24] : memref<1x4x16x8xf32, #tpu.memory_space<vmem>>, vector<1x1x16x8xf32>
    %23 = vector.shape_cast %22 : vector<1x1x16x8xf32> to vector<16x8xf32>
    %c0_25 = arith.constant 0 : index
    %c1_26 = arith.constant 1 : index
    %c0_27 = arith.constant 0 : index
    %c0_28 = arith.constant 0 : index
    %24 = vector.load %arg5[%c0_25, %c1_26, %c0_27, %c0_28] : memref<1x4x16x8xf32, #tpu.memory_space<vmem>>, vector<1x1x16x8xf32>
    %25 = vector.shape_cast %24 : vector<1x1x16x8xf32> to vector<16x8xf32>
    %cst_29 = arith.constant dense<0.000000e+00> : vector<16x16xf32>
    %26 = tpu.matmul %21, %23, %cst_29 {dimension_numbers = #tpu.dot_dimension_numbers<[1], [1], [0], [0], [0, 0, 1, 0], [], []>} : vector<16x8xf32>, vector<16x8xf32>, vector<16x16xf32> -> vector<16x16xf32>
    %cst_30 = arith.constant dense<0xFF800000> : vector<16xf32>
    %27 = vector.multi_reduction <maximumf>, %26, %cst_30 [1] : vector<16x16xf32> to vector<16xf32>
    %28 = vector.shape_cast %27 : vector<16xf32> to vector<16x1xf32>
    %29 = vector.broadcast %28 : vector<16x1xf32> to vector<16x16xf32>
    %30 = arith.subf %26, %29 : vector<16x16xf32>
    %31 = math.exp %30 : vector<16x16xf32>
    %cst_31 = arith.constant dense<0.000000e+00> : vector<16xf32>
    %32 = vector.multi_reduction <add>, %31, %cst_31 [1] : vector<16x16xf32> to vector<16xf32>
    %33 = vector.shape_cast %32 : vector<16xf32> to vector<16x1xf32>
    %34 = vector.broadcast %33 : vector<16x1xf32> to vector<16x16xf32>
    %35 = arith.divf %31, %34 : vector<16x16xf32>
    %c1_32 = arith.constant 1 : index
    %c0_33 = arith.constant 0 : index
    %c0_34 = arith.constant 0 : index
    %c0_35 = arith.constant 0 : index
    %36 = vector.load %arg7[%c1_32, %c0_33, %c0_34, %c0_35] : memref<4x1x16x16xf32, #tpu.memory_space<vmem>>, vector<1x1x16x16xf32>
    %37 = vector.shape_cast %36 : vector<1x1x16x16xf32> to vector<16x16xf32>
    %38 = vector.shape_cast %35 : vector<16x16xf32> to vector<1x1x16x16xf32>
    tpu.vector_store %arg7[%c1_32, %c0_33, %c0_34, %c0_35], %38 {strides = array<i32>} : memref<4x1x16x16xf32, #tpu.memory_space<vmem>>, vector<1x1x16x16xf32>,
    %cst_36 = arith.constant dense<0.000000e+00> : vector<16x8xf32>
    %39 = tpu.matmul %35, %25, %cst_36 {dimension_numbers = #tpu.dot_dimension_numbers<[1], [0], [0], [1], [0, 0, 1, 1], [], []>} : vector<16x16xf32>, vector<16x8xf32>, vector<16x8xf32> -> vector<16x8xf32>
    %c0_37 = arith.constant 0 : index
    %c2 = arith.constant 2 : index
    %c0_38 = arith.constant 0 : index
    %c0_39 = arith.constant 0 : index
    %40 = vector.load %arg3[%c0_37, %c2, %c0_38, %c0_39] : memref<1x4x16x8xf32, #tpu.memory_space<vmem>>, vector<1x1x16x8xf32>
    %41 = vector.shape_cast %40 : vector<1x1x16x8xf32> to vector<16x8xf32>
    %c0_40 = arith.constant 0 : index
    %c2_41 = arith.constant 2 : index
    %c0_42 = arith.constant 0 : index
    %c0_43 = arith.constant 0 : index
    %42 = vector.load %arg4[%c0_40, %c2_41, %c0_42, %c0_43] : memref<1x4x16x8xf32, #tpu.memory_space<vmem>>, vector<1x1x16x8xf32>
    %43 = vector.shape_cast %42 : vector<1x1x16x8xf32> to vector<16x8xf32>
    %c0_44 = arith.constant 0 : index
    %c2_45 = arith.constant 2 : index
    %c0_46 = arith.constant 0 : index
    %c0_47 = arith.constant 0 : index
    %44 = vector.load %arg5[%c0_44, %c2_45, %c0_46, %c0_47] : memref<1x4x16x8xf32, #tpu.memory_space<vmem>>, vector<1x1x16x8xf32>
    %45 = vector.shape_cast %44 : vector<1x1x16x8xf32> to vector<16x8xf32>
    %cst_48 = arith.constant dense<0.000000e+00> : vector<16x16xf32>
    %46 = tpu.matmul %41, %43, %cst_48 {dimension_numbers = #tpu.dot_dimension_numbers<[1], [1], [0], [0], [0, 0, 1, 0], [], []>} : vector<16x8xf32>, vector<16x8xf32>, vector<16x16xf32> -> vector<16x16xf32>
    %cst_49 = arith.constant dense<0xFF800000> : vector<16xf32>
    %47 = vector.multi_reduction <maximumf>, %46, %cst_49 [1] : vector<16x16xf32> to vector<16xf32>
    %48 = vector.shape_cast %47 : vector<16xf32> to vector<16x1xf32>
    %49 = vector.broadcast %48 : vector<16x1xf32> to vector<16x16xf32>
    %50 = arith.subf %46, %49 : vector<16x16xf32>
    %51 = math.exp %50 : vector<16x16xf32>
    %cst_50 = arith.constant dense<0.000000e+00> : vector<16xf32>
    %52 = vector.multi_reduction <add>, %51, %cst_50 [1] : vector<16x16xf32> to vector<16xf32>
    %53 = vector.shape_cast %52 : vector<16xf32> to vector<16x1xf32>
    %54 = vector.broadcast %53 : vector<16x1xf32> to vector<16x16xf32>
    %55 = arith.divf %51, %54 : vector<16x16xf32>
    %c2_51 = arith.constant 2 : index
    %c0_52 = arith.constant 0 : index
    %c0_53 = arith.constant 0 : index
    %c0_54 = arith.constant 0 : index
    %56 = vector.load %arg7[%c2_51, %c0_52, %c0_53, %c0_54] : memref<4x1x16x16xf32, #tpu.memory_space<vmem>>, vector<1x1x16x16xf32>
    %57 = vector.shape_cast %56 : vector<1x1x16x16xf32> to vector<16x16xf32>
    %58 = vector.shape_cast %55 : vector<16x16xf32> to vector<1x1x16x16xf32>
    tpu.vector_store %arg7[%c2_51, %c0_52, %c0_53, %c0_54], %58 {strides = array<i32>} : memref<4x1x16x16xf32, #tpu.memory_space<vmem>>, vector<1x1x16x16xf32>,
    %cst_55 = arith.constant dense<0.000000e+00> : vector<16x8xf32>
    %59 = tpu.matmul %55, %45, %cst_55 {dimension_numbers = #tpu.dot_dimension_numbers<[1], [0], [0], [1], [0, 0, 1, 1], [], []>} : vector<16x16xf32>, vector<16x8xf32>, vector<16x8xf32> -> vector<16x8xf32>
    %c0_56 = arith.constant 0 : index
    %c3 = arith.constant 3 : index
    %c0_57 = arith.constant 0 : index
    %c0_58 = arith.constant 0 : index
    %60 = vector.load %arg3[%c0_56, %c3, %c0_57, %c0_58] : memref<1x4x16x8xf32, #tpu.memory_space<vmem>>, vector<1x1x16x8xf32>
    %61 = vector.shape_cast %60 : vector<1x1x16x8xf32> to vector<16x8xf32>
    %c0_59 = arith.constant 0 : index
    %c3_60 = arith.constant 3 : index
    %c0_61 = arith.constant 0 : index
    %c0_62 = arith.constant 0 : index
    %62 = vector.load %arg4[%c0_59, %c3_60, %c0_61, %c0_62] : memref<1x4x16x8xf32, #tpu.memory_space<vmem>>, vector<1x1x16x8xf32>
    %63 = vector.shape_cast %62 : vector<1x1x16x8xf32> to vector<16x8xf32>
    %c0_63 = arith.constant 0 : index
    %c3_64 = arith.constant 3 : index
    %c0_65 = arith.constant 0 : index
    %c0_66 = arith.constant 0 : index
    %64 = vector.load %arg5[%c0_63, %c3_64, %c0_65, %c0_66] : memref<1x4x16x8xf32, #tpu.memory_space<vmem>>, vector<1x1x16x8xf32>
    %65 = vector.shape_cast %64 : vector<1x1x16x8xf32> to vector<16x8xf32>
    %cst_67 = arith.constant dense<0.000000e+00> : vector<16x16xf32>
    %66 = tpu.matmul %61, %63, %cst_67 {dimension_numbers = #tpu.dot_dimension_numbers<[1], [1], [0], [0], [0, 0, 1, 0], [], []>} : vector<16x8xf32>, vector<16x8xf32>, vector<16x16xf32> -> vector<16x16xf32>
    %cst_68 = arith.constant dense<0xFF800000> : vector<16xf32>
    %67 = vector.multi_reduction <maximumf>, %66, %cst_68 [1] : vector<16x16xf32> to vector<16xf32>
    %68 = vector.shape_cast %67 : vector<16xf32> to vector<16x1xf32>
    %69 = vector.broadcast %68 : vector<16x1xf32> to vector<16x16xf32>
    %70 = arith.subf %66, %69 : vector<16x16xf32>
    %71 = math.exp %70 : vector<16x16xf32>
    %cst_69 = arith.constant dense<0.000000e+00> : vector<16xf32>
    %72 = vector.multi_reduction <add>, %71, %cst_69 [1] : vector<16x16xf32> to vector<16xf32>
    %73 = vector.shape_cast %72 : vector<16xf32> to vector<16x1xf32>
    %74 = vector.broadcast %73 : vector<16x1xf32> to vector<16x16xf32>
    %75 = arith.divf %71, %74 : vector<16x16xf32>
    %c3_70 = arith.constant 3 : index
    %c0_71 = arith.constant 0 : index
    %c0_72 = arith.constant 0 : index
    %c0_73 = arith.constant 0 : index
    %76 = vector.load %arg7[%c3_70, %c0_71, %c0_72, %c0_73] : memref<4x1x16x16xf32, #tpu.memory_space<vmem>>, vector<1x1x16x16xf32>
    %77 = vector.shape_cast %76 : vector<1x1x16x16xf32> to vector<16x16xf32>
    %78 = vector.shape_cast %75 : vector<16x16xf32> to vector<1x1x16x16xf32>
    tpu.vector_store %arg7[%c3_70, %c0_71, %c0_72, %c0_73], %78 {strides = array<i32>} : memref<4x1x16x16xf32, #tpu.memory_space<vmem>>, vector<1x1x16x16xf32>,
    %cst_74 = arith.constant dense<0.000000e+00> : vector<16x8xf32>
    %79 = tpu.matmul %75, %65, %cst_74 {dimension_numbers = #tpu.dot_dimension_numbers<[1], [0], [0], [1], [0, 0, 1, 1], [], []>} : vector<16x16xf32>, vector<16x8xf32>, vector<16x8xf32> -> vector<16x8xf32>
    %80 = tpu.concatenate %19, %39, %59, %79 in 1 : vector<16x8xf32>, vector<16x8xf32>, vector<16x8xf32>, vector<16x8xf32> -> vector<16x32xf32>
    %c0_75 = arith.constant 0 : index
    %c0_76 = arith.constant 0 : index
    %c0_77 = arith.constant 0 : index
    %81 = vector.load %arg6[%c0_75, %c0_76, %c0_77] : memref<1x16x32xf32, #tpu.memory_space<vmem>>, vector<1x16x32xf32>
    %82 = vector.shape_cast %81 : vector<1x16x32xf32> to vector<16x32xf32>
    %83 = vector.shape_cast %80 : vector<16x32xf32> to vector<1x16x32xf32>
    tpu.vector_store %arg6[%c0_75, %c0_76, %c0_77], %83 {strides = array<i32>} : memref<1x16x32xf32, #tpu.memory_space<vmem>>, vector<1x16x32xf32>,
    return
  }
  func.func @transform_0(%arg0: i32, %arg1: i32, %arg2: i32) -> (i32, i32, i32, i32) {
    %c0_i32 = arith.constant 0 : i32
    %c0_i32_0 = arith.constant 0 : i32
    return %arg0, %arg1, %arg2, %c0_i32 : i32, i32, i32, i32
  }
  func.func @transform_1(%arg0: i32, %arg1: i32, %arg2: i32) -> (i32, i32, i32, i32) {
    %c0_i32 = arith.constant 0 : i32
    %c0_i32_0 = arith.constant 0 : i32
    %c0_i32_1 = arith.constant 0 : i32
    return %arg0, %arg1, %c0_i32, %c0_i32_0 : i32, i32, i32, i32
  }
  func.func @transform_2(%arg0: i32, %arg1: i32, %arg2: i32) -> (i32, i32, i32, i32) {
    %c0_i32 = arith.constant 0 : i32
    %c0_i32_0 = arith.constant 0 : i32
    %c0_i32_1 = arith.constant 0 : i32
    return %arg0, %arg1, %c0_i32, %c0_i32_0 : i32, i32, i32, i32
  }
  func.func @transform_3(%arg0: i32, %arg1: i32, %arg2: i32) -> (i32, i32, i32) {
    %c0_i32 = arith.constant 0 : i32
    return %arg0, %arg2, %arg1 : i32, i32, i32
  }
  func.func @transform_4(%arg0: i32, %arg1: i32, %arg2: i32) -> (i32, i32, i32, i32) {
    %c0_i32 = arith.constant 0 : i32
    %c0_i32_0 = arith.constant 0 : i32
    return %arg1, %arg0, %arg2, %c0_i32 : i32, i32, i32, i32
  }
}

</mosaic_0001>

<llo_original>
// kernel: tpu_custom_call.1
$region0: #{tpu_custom_call.1}
  #allocation0 [shape = 'u32[]', space=smem, size = 0x4, offset = 0x4, fixed_abs, tag = 'smem constant byte address 0x4 - core index']
  #allocation1 [shape = 'u32[144,128]{1,0:T(1,128)}', space=vmem, size = 0x12000, scoped, tag = 'internal scratch']
  #allocation6 [shape = 's32[]', space=sflag, size = 0x4, offset = 0, fixed_abs, tag = 'sflag constant byte address 0x0 - dummy sync flag']
  %s0 = inlined_call_operand.vmem [shape: f32[2,4,16,8], index: 0, kind: input, shape index: {}]
  %s1 = inlined_call_operand.vmem [shape: f32[2,4,16,8], index: 1, kind: input, shape index: {}]
  %s2 = inlined_call_operand.vmem [shape: f32[2,4,16,8], index: 2, kind: input, shape index: {}]
  %s3 = inlined_call_operand.hbm [shape: f32[2,16,32], index: 3, kind: output, shape index: {0}]
  %s4 = inlined_call_operand.hbm [shape: f32[4,2,16,16], index: 4, kind: output, shape index: {1}]
  %5 = xla_tuple %s3, %s4
  %s6 = sld [smem:[#allocation0]]
  $region53: #{tpu_custom_call.1} parent=0
    _
  %s8 = ssub.s32 1, %s6
  %s9 = scalar_select 0, %s8, %s6
  $region1: #{tpu_custom_call.1} parent=0
    #allocation2 [shape = 'u8[16384]{0}', space=vmem, size = 0x4000, scoped, tag = 'output window, operand 0']
    #allocation3 [shape = 's32[2]{0}', space=sflag, size = 0x8, scoped, tag = 'scoped memory for tpu_custom_call.1']
    #allocation4 [shape = 'u8[65536]{0}', space=vmem, size = 0x10000, scoped, tag = 'output window, operand 1']
    #allocation5 [shape = 's32[2]{0}', space=sflag, size = 0x8, scoped, tag = 'scoped memory for tpu_custom_call.1']
    %10 = vsyncpa [#allocation3], 0
    %s11 = scalar_lea.sflag [#allocation3], 1
    %12 = vsyncpa %s11, 0
    %13 = vsyncpa [#allocation5], 0
    %s14 = scalar_lea.sflag [#allocation5], 1
    %15 = vsyncpa %s14, 0
    loop: start=0, step=1, limit=4
    $region2: #{tpu_custom_call.1} parent=1 // loop_pre_header
      _
    $region3: #{tpu_custom_call.1} parent=1 // loop_header
      %s17 = sphi 0, %s21
      %p18 = scmp.ge.s32.totalorder %s17, 4
      %s24 = sphi 0, %s43
      %s25 = sphi 0, %s39
      %s26 = sphi 0, %s35
      %s27 = sphi 0, %s24
      %s28 = sphi 0, %s25
      %s29 = sphi 0, %s26
      %s30 = sphi 0, %s27
      %s31 = sphi 0, %s28
      %s32 = sphi 0, %s29
      %s50 = sphi 0, %s52
      %s53 = sphi 0, %s50
      %s54 = sphi 0, %s53
      %s70 = sphi 0, %s54
      %s78 = sphi 0, %s80
      %s81 = sphi 0, %s78
      %s82 = sphi 0, %s81
      %s98 = sphi 0, %s82
      %s106 = sphi 0, %s108
      %s109 = sphi 0, %s106
      %s110 = sphi 0, %s109
      %s126 = sphi 0, %s110
      %s136 = sphi 0, %s138
      %s139 = sphi 0, %s136
      %s140 = sphi 0, %s139
      %s156 = sphi 0, %s140
      %s166 = sphi 0, %s168
      %s169 = sphi 0, %s166
      %s170 = sphi 0, %s169
      %s186 = sphi 0, %s170
    $region4: #{tpu_custom_call.1} parent=1 // loop_header_branch
      %20 = sbr.rel (%p18) target = $region8
    $region5: #{tpu_custom_call.1} parent=1 // loop_body
      %s22 = ssub.s32 %s17, 1
      %s23 = ssub.s32 %s17, 2
      %s33 = sadd.s32 1, %s26
      %p34 = scmp.ge.s32.totalorder %s33, 1
      %s35 = scalar_select %p34, 0, %s33
      %s36 = sadd.s32 1, %s25
      %s37 = scalar_select %p34, %s36, %s25
      %p38 = scmp.ge.s32.totalorder %s37, 1
      %s39 = scalar_select %p38, 0, %s37
      %s40 = sadd.s32 1, %s24
      %s41 = scalar_select %p38, %s40, %s24
      %p42 = scmp.ge.s32.totalorder %s41, 2
      %s43 = scalar_select %p42, 0, %s41
      %s44 = ssub.s32 %s24, %s43
      %s45 = ssub.s32 %s25, %s39
      %s46 = sor.u32 %s44, %s45
      %s47 = ssub.s32 %s26, %s35
      %s48 = sor.u32 %s46, %s47
      %p49 = scmp.eq.s32.totalorder %s48, 0
      %s51 = sadd.s32 %s50, 1
      %s52 = scalar_select %p49, %s50, %s51
      %p55 = pneg %p49
      %p56 = scmp.eq.s32.totalorder %s17, 1
      %p57 = por %p55, %p56
      %p58 = scmp.ne.s32.totalorder %s50, %s53
      %p59 = scmp.eq.s32.totalorder %s17, 0
      %p60 = por %p58, %p59
      %p61 = scmp.ne.s32.totalorder %s50, %s53
      %p62 = scmp.eq.s32.totalorder %s22, 1
      %p63 = por %p61, %p62
      %p64 = scmp.ne.s32.totalorder %s53, %s54
      %p65 = scmp.eq.s32.totalorder %s22, 0
      %p66 = por %p64, %p65
      %p67 = scmp.ne.s32.totalorder %s53, %s54
      %p68 = scmp.eq.s32.totalorder %s23, 1
      %p69 = por %p67, %p68
      %p71 = scmp.ne.s32.totalorder %s54, %s70
      %p72 = scmp.eq.s32.totalorder %s23, 0
      %p73 = por %p71, %p72
      %s74 = ssub.s32 %s24, %s43
      %s75 = ssub.s32 %s25, %s39
      %s76 = sor.u32 %s74, %s75
      %p77 = scmp.eq.s32.totalorder %s76, 0
      %s79 = sadd.s32 %s78, 1
      %s80 = scalar_select %p77, %s78, %s79
      %p83 = pneg %p77
      %p84 = scmp.eq.s32.totalorder %s17, 1
      %p85 = por %p83, %p84
      %p86 = scmp.ne.s32.totalorder %s78, %s81
      %p87 = scmp.eq.s32.totalorder %s17, 0
      %p88 = por %p86, %p87
      %p89 = scmp.ne.s32.totalorder %s78, %s81
      %p90 = scmp.eq.s32.totalorder %s22, 1
      %p91 = por %p89, %p90
      %p92 = scmp.ne.s32.totalorder %s81, %s82
      %p93 = scmp.eq.s32.totalorder %s22, 0
      %p94 = por %p92, %p93
      %p95 = scmp.ne.s32.totalorder %s81, %s82
      %p96 = scmp.eq.s32.totalorder %s23, 1
      %p97 = por %p95, %p96
      %p99 = scmp.ne.s32.totalorder %s82, %s98
      %p100 = scmp.eq.s32.totalorder %s23, 0
      %p101 = por %p99, %p100
      %s102 = ssub.s32 %s24, %s43
      %s103 = ssub.s32 %s25, %s39
      %s104 = sor.u32 %s102, %s103
      %p105 = scmp.eq.s32.totalorder %s104, 0
      %s107 = sadd.s32 %s106, 1
      %s108 = scalar_select %p105, %s106, %s107
      %p111 = pneg %p105
      %p112 = scmp.eq.s32.totalorder %s17, 1
      %p113 = por %p111, %p112
      %p114 = scmp.ne.s32.totalorder %s106, %s109
      %p115 = scmp.eq.s32.totalorder %s17, 0
      %p116 = por %p114, %p115
      %p117 = scmp.ne.s32.totalorder %s106, %s109
      %p118 = scmp.eq.s32.totalorder %s22, 1
      %p119 = por %p117, %p118
      %p120 = scmp.ne.s32.totalorder %s109, %s110
      %p121 = scmp.eq.s32.totalorder %s22, 0
      %p122 = por %p120, %p121
      %p123 = scmp.ne.s32.totalorder %s109, %s110
      %p124 = scmp.eq.s32.totalorder %s23, 1
      %p125 = por %p123, %p124
      %p127 = scmp.ne.s32.totalorder %s110, %s126
      %p128 = scmp.eq.s32.totalorder %s23, 0
      %p129 = por %p127, %p128
      %s130 = ssub.s32 %s24, %s43
      %s131 = ssub.s32 %s26, %s35
      %s132 = sor.u32 %s130, %s131
      %s133 = ssub.s32 %s25, %s39
      %s134 = sor.u32 %s132, %s133
      %p135 = scmp.eq.s32.totalorder %s134, 0
      %s137 = sadd.s32 %s136, 1
      %s138 = scalar_select %p135, %s136, %s137
      %p141 = pneg %p135
      %p142 = scmp.eq.s32.totalorder %s17, 1
      %p143 = por %p141, %p142
      %p144 = scmp.ne.s32.totalorder %s136, %s139
      %p145 = scmp.eq.s32.totalorder %s17, 0
      %p146 = por %p144, %p145
      %p147 = scmp.ne.s32.totalorder %s136, %s139
      %p148 = scmp.eq.s32.totalorder %s22, 1
      %p149 = por %p147, %p148
      %p150 = scmp.ne.s32.totalorder %s139, %s140
      %p151 = scmp.eq.s32.totalorder %s22, 0
      %p152 = por %p150, %p151
      %p153 = scmp.ne.s32.totalorder %s139, %s140
      %p154 = scmp.eq.s32.totalorder %s23, 1
      %p155 = por %p153, %p154
      %p157 = scmp.ne.s32.totalorder %s140, %s156
      %p158 = scmp.eq.s32.totalorder %s23, 0
      %p159 = por %p157, %p158
      %s160 = ssub.s32 %s25, %s39
      %s161 = ssub.s32 %s24, %s43
      %s162 = sor.u32 %s160, %s161
      %s163 = ssub.s32 %s26, %s35
      %s164 = sor.u32 %s162, %s163
      %p165 = scmp.eq.s32.totalorder %s164, 0
      %s167 = sadd.s32 %s166, 1
      %s168 = scalar_select %p165, %s166, %s167
      %p171 = pneg %p165
      %p172 = scmp.eq.s32.totalorder %s17, 1
      %p173 = por %p171, %p172
      %p174 = scmp.ne.s32.totalorder %s166, %s169
      %p175 = scmp.eq.s32.totalorder %s17, 0
      %p176 = por %p174, %p175
      %p177 = scmp.ne.s32.totalorder %s166, %s169
      %p178 = scmp.eq.s32.totalorder %s22, 1
      %p179 = por %p177, %p178
      %p180 = scmp.ne.s32.totalorder %s169, %s170
      %p181 = scmp.eq.s32.totalorder %s22, 0
      %p182 = por %p180, %p181
      %p183 = scmp.ne.s32.totalorder %s169, %s170
      %p184 = scmp.eq.s32.totalorder %s23, 1
      %p185 = por %p183, %p184
      %p187 = scmp.ne.s32.totalorder %s170, %s186
      %p188 = scmp.eq.s32.totalorder %s23, 0
      %p189 = por %p187, %p188
      %p190 = scmp.le.s32.totalorder 1, %s17
      %p191 = scmp.lt.s32.totalorder %s17, 3
      %p192 = pnand %p190, %p191
      %p193 = pneg %p192
      // Predicated region
      $region9: #{tpu_custom_call.1} parent=5 // pred_check
        _
      $region10: #{tpu_custom_call.1} parent=5 // pred_check_branch
        %195 = sbr.rel (%p192) target = $region12
      $region11: #{tpu_custom_call.1} parent=5 // pred_region
        %s196 = ssub.s32 %s17, 1
      $region12: #{tpu_custom_call.1} parent=5 // pred_fallthru
        _
      %p197 = scmp.lt.s32.totalorder %s17, 2
      // Predicated region
      $region13: #{tpu_custom_call.1} parent=5 // pred_check
        %p198 = pneg %p197
      $region14: #{tpu_custom_call.1} parent=5 // pred_check_branch
        %200 = sbr.rel (%p198) target = $region16
      $region15: #{tpu_custom_call.1} parent=5 // pred_region
        // Predicated region
        $region17: #{tpu_custom_call.1} parent=15 // pred_check
          %p201 = pneg %p60
        $region18: #{tpu_custom_call.1} parent=15 // pred_check_branch
          %203 = sbr.rel (%p201) target = $region20
        $region19: #{tpu_custom_call.1} parent=15 // pred_region
          %s204 = smul.u32 4, %s25
          %s205 = smul.u32 2, %s26
          %p206 = scmp.lt.s32.totalorder %s24, 1
          %s207 = scalar_select %p206, %s24, 1
          %p208 = scmp.lt.s32.totalorder %s204, 3
          %s209 = scalar_select %p208, %s204, 3
          %p210 = scmp.lt.s32.totalorder %s205, 1
          %s211 = scalar_select %p210, %s205, 1
          %s212 = smul.addr %s209, 2
          %s213 = sadd.s32 %s211, %s212
          %s214 = smul.addr %s207, 8
          %s215 = sadd.s32 %s213, %s214
          %s216 = smul.addr %s215, 8
          %s217 = scalar_lea.vmem %s0, %s216
          %s218 = smul.u32 4, %s25
          %s219 = smul.u32 2, %s26
        $region20: #{tpu_custom_call.1} parent=15 // pred_fallthru
          _
        // Predicated region
        $region21: #{tpu_custom_call.1} parent=15 // pred_check
          %p220 = pneg %p88
        $region22: #{tpu_custom_call.1} parent=15 // pred_check_branch
          %222 = sbr.rel (%p220) target = $region24
        $region23: #{tpu_custom_call.1} parent=15 // pred_region
          %s223 = smul.u32 4, %s25
          %p224 = scmp.lt.s32.totalorder %s24, 1
          %s225 = scalar_select %p224, %s24, 1
          %p226 = scmp.lt.s32.totalorder %s223, 3
          %s227 = scalar_select %p226, %s223, 3
          %s228 = smul.addr %s227, 2
          %s229 = smul.addr %s225, 8
          %s230 = sadd.s32 %s228, %s229
          %s231 = smul.addr %s230, 8
          %s232 = scalar_lea.vmem %s1, %s231
          %s233 = smul.u32 4, %s25
        $region24: #{tpu_custom_call.1} parent=15 // pred_fallthru
          _
        // Predicated region
        $region25: #{tpu_custom_call.1} parent=15 // pred_check
          %p234 = pneg %p116
        $region26: #{tpu_custom_call.1} parent=15 // pred_check_branch
          %236 = sbr.rel (%p234) target = $region28
        $region27: #{tpu_custom_call.1} parent=15 // pred_region
          %s237 = smul.u32 4, %s25
          %p238 = scmp.lt.s32.totalorder %s24, 1
          %s239 = scalar_select %p238, %s24, 1
          %p240 = scmp.lt.s32.totalorder %s237, 3
          %s241 = scalar_select %p240, %s237, 3
          %s242 = smul.addr %s241, 2
          %s243 = smul.addr %s239, 8
          %s244 = sadd.s32 %s242, %s243
          %s245 = smul.addr %s244, 8
          %s246 = scalar_lea.vmem %s2, %s245
          %s247 = smul.u32 4, %s25
        $region28: #{tpu_custom_call.1} parent=15 // pred_fallthru
          _
      $region16: #{tpu_custom_call.1} parent=5 // pred_fallthru
        _
      %p248 = scmp.le.s32.totalorder 1, %s17
      %p249 = scmp.lt.s32.totalorder %s17, 3
      %p250 = pnand %p248, %p249
      %p251 = pneg %p250
      // Predicated region
      $region29: #{tpu_custom_call.1} parent=5 // pred_check
        _
      $region30: #{tpu_custom_call.1} parent=5 // pred_check_branch
        %253 = sbr.rel (%p250) target = $region32
      $region31: #{tpu_custom_call.1} parent=5 // pred_region
        %s254 = ssub.s32 %s17, 1
        %s255 = smul.u32 4, %s28
        %s256 = smul.u32 2, %s29
        %p257 = scmp.lt.s32.totalorder %s27, 1
        %s258 = scalar_select %p257, %s27, 1
        %p259 = scmp.lt.s32.totalorder %s255, 3
        %s260 = scalar_select %p259, %s255, 3
        %p261 = scmp.lt.s32.totalorder %s256, 1
        %s262 = scalar_select %p261, %s256, 1
        %s263 = smul.addr %s260, 2
        %s264 = sadd.s32 %s262, %s263
        %s265 = smul.addr %s258, 8
        %s266 = sadd.s32 %s264, %s265
        %s267 = smul.addr %s266, 8
        %s268 = scalar_lea.vmem %s0, %s267
        %p269 = pneg %p66
        %p270 = pneg %p63
        %s271 = smul.u32 4, %s28
        %p272 = scmp.lt.s32.totalorder %s27, 1
        %s273 = scalar_select %p272, %s27, 1
        %p274 = scmp.lt.s32.totalorder %s271, 3
        %s275 = scalar_select %p274, %s271, 3
        %s276 = smul.addr %s275, 2
        %s277 = smul.addr %s273, 8
        %s278 = sadd.s32 %s276, %s277
        %s279 = smul.addr %s278, 8
        %s280 = scalar_lea.vmem %s1, %s279
        %p281 = pneg %p94
        %p282 = pneg %p91
        %s283 = smul.u32 4, %s28
        %p284 = scmp.lt.s32.totalorder %s27, 1
        %s285 = scalar_select %p284, %s27, 1
        %p286 = scmp.lt.s32.totalorder %s283, 3
        %s287 = scalar_select %p286, %s283, 3
        %s288 = smul.addr %s287, 2
        %s289 = smul.addr %s285, 8
        %s290 = sadd.s32 %s288, %s289
        %s291 = smul.addr %s290, 8
        %s292 = scalar_lea.vmem %s2, %s291
        %p293 = pneg %p122
        %p294 = pneg %p119
        %p295 = pneg %p152
        %p296 = pneg %p149
        %s297 = sand.u32 %s139, 1
        %s298 = scalar_lea.sflag [#allocation3], %s297
        %s299 = sand.u32 %s139, 1
        %s300 = smul.addr %s299, 16
        %s301 = scalar_lea.vmem [#allocation2], %s300
        %p302 = pneg %p182
        %p303 = pneg %p179
        %s304 = sand.u32 %s169, 1
        %s305 = scalar_lea.sflag [#allocation5], %s304
        %s306 = sand.u32 %s169, 1
        %s307 = smul.addr %s306, 64
        %s308 = scalar_lea.vmem [#allocation4], %s307
        %s309 = smul.u32 4, %s28
        %s310 = smul.u32 2, %s29
        %p311 = scmp.lt.s32.totalorder %s27, 1
        %s312 = scalar_select %p311, %s27, 1
        %p313 = scmp.lt.s32.totalorder %s309, 3
        %s314 = scalar_select %p313, %s309, 3
        %p315 = scmp.lt.s32.totalorder %s310, 1
        %s316 = scalar_select %p315, %s310, 1
        %s317 = smul.addr %s314, 2
        %s318 = sadd.s32 %s316, %s317
        %s319 = smul.addr %s312, 8
        %s320 = sadd.s32 %s318, %s319
        %s321 = smul.addr %s320, 8
        %s322 = scalar_lea.vmem %s0, %s321
        %s323 = smul.u32 4, %s28
        %s324 = smul.u32 2, %s29
        %s325 = smul.u32 4, %s28
        %p326 = scmp.lt.s32.totalorder %s27, 1
        %s327 = scalar_select %p326, %s27, 1
        %p328 = scmp.lt.s32.totalorder %s325, 3
        %s329 = scalar_select %p328, %s325, 3
        %s330 = smul.addr %s329, 2
        %s331 = smul.addr %s327, 8
        %s332 = sadd.s32 %s330, %s331
        %s333 = smul.addr %s332, 8
        %s334 = scalar_lea.vmem %s1, %s333
        %s335 = smul.u32 4, %s28
        %s336 = smul.u32 4, %s28
        %p337 = scmp.lt.s32.totalorder %s27, 1
        %s338 = scalar_select %p337, %s27, 1
        %p339 = scmp.lt.s32.totalorder %s336, 3
        %s340 = scalar_select %p339, %s336, 3
        %s341 = smul.addr %s340, 2
        %s342 = smul.addr %s338, 8
        %s343 = sadd.s32 %s341, %s342
        %s344 = smul.addr %s343, 8
        %s345 = scalar_lea.vmem %s2, %s344
        %s346 = smul.u32 4, %s28
        %s347 = smul.u32 2, %s29
        %s348 = smul.u32 4, %s28
        %s349 = smul.u32 2, %s29
        %v350 = vld [vmem:[%s322] sm:$0xff]
        %v351 = vld [vmem:[%s322 + $0x8] sm:$0xff]
        %v352 = vld [vmem:[%s334] sm:$0xff]
        %v353 = vld [vmem:[%s334 + $0x8] sm:$0xff]
        %v354 = vld [vmem:[%s345] sm:$0xff]
        %v355 = vld [vmem:[%s345 + $0x8] sm:$0xff]
        %vm356 = vcmask 64512
        %v358 = vsel %vm356, %v350, 0
        %v361 = vsel %vm356, %v351, 0
        %v364 = vsel %vm356, %v352, 0
        %v367 = vsel %vm356, %v353, 0
        %369 = vmatprep.subr.mxu0 0.0
        %370 = vmatpush1.xpose.msra.mxu0 %v364
        %371 = vmatprep.subr.mxu0 0.0
        %372 = vmatpush1.xpose.msra.mxu0 %v367
        %373 = vmatprep.subr.mxu0 0.0
        %374 = vmatpush1.xpose.msra.mxu0 0.0
        %375 = vmatprep.subr.mxu0 0.0
        %376 = vmatpush1.xpose.msra.mxu0 0.0
        %377 = vmatprep.subr.mxu0 0.0
        %378 = vmatpush1.xpose.msra.mxu0 0.0
        %379 = vmatprep.subr.mxu0 0.0
        %380 = vmatpush1.xpose.msra.mxu0 0.0
        %381 = vmatprep.subr.mxu0 0.0
        %382 = vmatpush1.xpose.msra.mxu0 0.0
        %383 = vmatprep.subr.mxu0 0.0
        %384 = vmatpush1.xpose.msra.mxu0 0.0
        %385 = vmatprep.subr.mxu0 0.0
        %386 = vmatpush1.xpose.msra.mxu0 0.0
        %387 = vmatprep.subr.mxu0 0.0
        %388 = vmatpush1.xpose.msra.mxu0 0.0
        %389 = vmatprep.subr.mxu0 0.0
        %390 = vmatpush1.xpose.msra.mxu0 0.0
        %391 = vmatprep.subr.mxu0 0.0
        %392 = vmatpush1.xpose.msra.mxu0 0.0
        %393 = vmatprep.subr.mxu0 0.0
        %394 = vmatpush1.xpose.msra.mxu0 0.0
        %395 = vmatprep.subr.mxu0 0.0
        %396 = vmatpush1.xpose.msra.mxu0 0.0
        %397 = vmatprep.subr.mxu0 0.0
        %398 = vmatpush1.xpose.msra.mxu0 0.0
        %399 = vmatprep.subr.mxu0 0.0
        %400 = vmatpush1.xpose.msra.mxu0 0.0
        %401 = vmatprep.subr.mxu0 0.0
        %402 = vmatpush1.xpose.msra.mxu0 0.0
        %403 = vmatprep.subr.mxu0 0.0
        %404 = vmatpush1.xpose.msra.mxu0 0.0
        %405 = vmatprep.subr.mxu0 0.0
        %406 = vmatpush1.xpose.msra.mxu0 0.0
        %407 = vmatprep.subr.mxu0 0.0
        %408 = vmatpush1.xpose.msra.mxu0 0.0
        %409 = vmatprep.subr.mxu0 0.0
        %410 = vmatpush1.xpose.msra.mxu0 0.0
        %411 = vmatprep.subr.mxu0 0.0
        %412 = vmatpush1.xpose.msra.mxu0 0.0
        %413 = vmatprep.subr.mxu0 0.0
        %414 = vmatpush1.xpose.msra.mxu0 0.0
        %415 = vmatprep.subr.mxu0 0.0
        %416 = vmatpush1.xpose.msra.mxu0 0.0
        %417 = vmatprep.subr.mxu0 0.0
        %418 = vmatpush1.xpose.msra.mxu0 0.0
        %419 = vmatprep.subr.mxu0 0.0
        %420 = vmatpush1.xpose.msra.mxu0 0.0
        %421 = vmatprep.subr.mxu0 0.0
        %422 = vmatpush1.xpose.msra.mxu0 0.0
        %423 = vmatprep.subr.mxu0 0.0
        %424 = vmatpush1.xpose.msra.mxu0 0.0
        %425 = vmatprep.subr.mxu0 0.0
        %426 = vmatpush1.xpose.msra.mxu0 0.0
        %427 = vmatprep.subr.mxu0 0.0
        %428 = vmatpush1.xpose.msra.mxu0 0.0
        %429 = vmatprep.subr.mxu0 0.0
        %430 = vmatpush1.xpose.msra.mxu0 0.0
        %431 = vmatprep.subr.mxu0 0.0
        %432 = vmatpush1.xpose.msra.mxu0 0.0
        %433 = vmatprep.mubr.f32.mxu0 0.0
        %434 = vmatmul.mubr.f32.gmra.mrb[0].mxu0 %v358
        %v435 = vpop.f32.mrb[0].mxu0
        %v436 = vadd.f32 0.0, %v435
        %v437 = vpop.f32.mrb[0].mxu0
        %438 = vmatprep.mubr.f32.mxu0 0.0
        %439 = vmatmul.mubr.f32.gmra.mrb[0].mxu0 %v361
        %v440 = vpop.f32.mrb[0].mxu0
        %v441 = vadd.f32 0.0, %v440
        %v442 = vpop.f32.mrb[0].mxu0
        %443 = vdwg.mxu0
        %vm444 = vcmask 130048
        %v445 = vsel %vm444, %v436, -inf
        %446 = vmax.xlane.f32.xlu0 %v445
        %v447 = vpop.xlane.xlu0 %446
        %v448 = vsel %vm444, %v441, -inf
        %449 = vmax.xlane.f32.xlu0 %v448
        %v450 = vpop.xlane.xlu0 %449
        %v451 = vsub.f32 %v436, %v447
        %v452 = vsub.f32 %v441, %v450
        %v453 = vmul.f32 %v451, 1.442695
        %v454 = vpow.pop %v453
        %v455 = vmul.f32 %v452, 1.442695
        %v456 = vpow.pop %v455
        %v457 = vsel %vm444, %v454, 0.0
        %458 = vadd.xlane.f32.xlu0 %v457
        %v459 = vpop.xlane.xlu0 %458
        %v460 = vsel %vm444, %v456, 0.0
        %461 = vadd.xlane.f32.xlu0 %v460
        %v462 = vpop.xlane.xlu0 %461
        %v463 = vrcp.pop %v459
        %v464 = vmul.f32 %v454, %v463
        %v465 = vrcp.pop %v462
        %v466 = vmul.f32 %v456, %v465
        %467 = vst.msk [vmem:[%s308] sm:$0xff] %vm444, %v464
        %468 = vst.msk [vmem:[%s308 + $0x8] sm:$0xff] %vm444, %v466
        %v470 = vsel %vm444, %v464, 0
        %v473 = vsel %vm444, %v466, 0
        %475 = vmatprep.subr.mxu0 0.0
        %476 = vmatpush1.msra.mxu0 %v354
        %477 = vmatprep.subr.mxu0 0.0
        %478 = vmatpush1.msra.mxu0 %v355
        %479 = vmatprep.subr.mxu0 0.0
        %480 = vmatpush1.msra.mxu0 0.0
        %481 = vmatprep.subr.mxu0 0.0
        %482 = vmatpush1.msra.mxu0 0.0
        %483 = vmatprep.subr.mxu0 0.0
        %484 = vmatpush1.msra.mxu0 0.0
        %485 = vmatprep.subr.mxu0 0.0
        %486 = vmatpush1.msra.mxu0 0.0
        %487 = vmatprep.subr.mxu0 0.0
        %488 = vmatpush1.msra.mxu0 0.0
        %489 = vmatprep.subr.mxu0 0.0
        %490 = vmatpush1.msra.mxu0 0.0
        %491 = vmatprep.subr.mxu0 0.0
        %492 = vmatpush1.msra.mxu0 0.0
        %493 = vmatprep.subr.mxu0 0.0
        %494 = vmatpush1.msra.mxu0 0.0
        %495 = vmatprep.subr.mxu0 0.0
        %496 = vmatpush1.msra.mxu0 0.0
        %497 = vmatprep.subr.mxu0 0.0
        %498 = vmatpush1.msra.mxu0 0.0
        %499 = vmatprep.subr.mxu0 0.0
        %500 = vmatpush1.msra.mxu0 0.0
        %501 = vmatprep.subr.mxu0 0.0
        %502 = vmatpush1.msra.mxu0 0.0
        %503 = vmatprep.subr.mxu0 0.0
        %504 = vmatpush1.msra.mxu0 0.0
        %505 = vmatprep.subr.mxu0 0.0
        %506 = vmatpush1.msra.mxu0 0.0
        %507 = vmatprep.subr.mxu0 0.0
        %508 = vmatpush1.msra.mxu0 0.0
        %509 = vmatprep.subr.mxu0 0.0
        %510 = vmatpush1.msra.mxu0 0.0
        %511 = vmatprep.subr.mxu0 0.0
        %512 = vmatpush1.msra.mxu0 0.0
        %513 = vmatprep.subr.mxu0 0.0
        %514 = vmatpush1.msra.mxu0 0.0
        %515 = vmatprep.subr.mxu0 0.0
        %516 = vmatpush1.msra.mxu0 0.0
        %517 = vmatprep.subr.mxu0 0.0
        %518 = vmatpush1.msra.mxu0 0.0
        %519 = vmatprep.subr.mxu0 0.0
        %520 = vmatpush1.msra.mxu0 0.0
        %521 = vmatprep.subr.mxu0 0.0
        %522 = vmatpush1.msra.mxu0 0.0
        %523 = vmatprep.subr.mxu0 0.0
        %524 = vmatpush1.msra.mxu0 0.0
        %525 = vmatprep.subr.mxu0 0.0
        %526 = vmatpush1.msra.mxu0 0.0
        %527 = vmatprep.subr.mxu0 0.0
        %528 = vmatpush1.msra.mxu0 0.0
        %529 = vmatprep.subr.mxu0 0.0
        %530 = vmatpush1.msra.mxu0 0.0
        %531 = vmatprep.subr.mxu0 0.0
        %532 = vmatpush1.msra.mxu0 0.0
        %533 = vmatprep.subr.mxu0 0.0
        %534 = vmatpush1.msra.mxu0 0.0
        %535 = vmatprep.subr.mxu0 0.0
        %536 = vmatpush1.msra.mxu0 0.0
        %537 = vmatprep.subr.mxu0 0.0
        %538 = vmatpush1.msra.mxu0 0.0
        %539 = vmatprep.mubr.f32.mxu0 0.0
        %540 = vmatmul.mubr.f32.gmra.mrb[0].mxu0 %v470
        %v541 = vpop.f32.mrb[0].mxu0
        %v542 = vadd.f32 0.0, %v541
        %v543 = vpop.f32.mrb[0].mxu0
        %544 = vmatprep.mubr.f32.mxu0 0.0
        %545 = vmatmul.mubr.f32.gmra.mrb[0].mxu0 %v473
        %v546 = vpop.f32.mrb[0].mxu0
        %v547 = vadd.f32 0.0, %v546
        %v548 = vpop.f32.mrb[0].mxu0
        %549 = vdwg.mxu0
        %s550 = scalar_lea.vmem %s322, 16
        %v551 = vld [vmem:[%s550] sm:$0xff]
        %v552 = vld [vmem:[%s550 + $0x8] sm:$0xff]
        %s553 = scalar_lea.vmem %s334, 16
        %v554 = vld [vmem:[%s553] sm:$0xff]
        %v555 = vld [vmem:[%s553 + $0x8] sm:$0xff]
        %s556 = scalar_lea.vmem %s345, 16
        %v557 = vld [vmem:[%s556] sm:$0xff]
        %v558 = vld [vmem:[%s556 + $0x8] sm:$0xff]
        %v560 = vsel %vm356, %v551, 0
        %v563 = vsel %vm356, %v552, 0
        %v566 = vsel %vm356, %v554, 0
        %v569 = vsel %vm356, %v555, 0
        %571 = vmatprep.subr.mxu0 0.0
        %572 = vmatpush1.xpose.msra.mxu0 %v566
        %573 = vmatprep.subr.mxu0 0.0
        %574 = vmatpush1.xpose.msra.mxu0 %v569
        %575 = vmatprep.subr.mxu0 0.0
        %576 = vmatpush1.xpose.msra.mxu0 0.0
        %577 = vmatprep.subr.mxu0 0.0
        %578 = vmatpush1.xpose.msra.mxu0 0.0
        %579 = vmatprep.subr.mxu0 0.0
        %580 = vmatpush1.xpose.msra.mxu0 0.0
        %581 = vmatprep.subr.mxu0 0.0
        %582 = vmatpush1.xpose.msra.mxu0 0.0
        %583 = vmatprep.subr.mxu0 0.0
        %584 = vmatpush1.xpose.msra.mxu0 0.0
        %585 = vmatprep.subr.mxu0 0.0
        %586 = vmatpush1.xpose.msra.mxu0 0.0
        %587 = vmatprep.subr.mxu0 0.0
        %588 = vmatpush1.xpose.msra.mxu0 0.0
        %589 = vmatprep.subr.mxu0 0.0
        %590 = vmatpush1.xpose.msra.mxu0 0.0
        %591 = vmatprep.subr.mxu0 0.0
        %592 = vmatpush1.xpose.msra.mxu0 0.0
        %593 = vmatprep.subr.mxu0 0.0
        %594 = vmatpush1.xpose.msra.mxu0 0.0
        %595 = vmatprep.subr.mxu0 0.0
        %596 = vmatpush1.xpose.msra.mxu0 0.0
        %597 = vmatprep.subr.mxu0 0.0
        %598 = vmatpush1.xpose.msra.mxu0 0.0
        %599 = vmatprep.subr.mxu0 0.0
        %600 = vmatpush1.xpose.msra.mxu0 0.0
        %601 = vmatprep.subr.mxu0 0.0
        %602 = vmatpush1.xpose.msra.mxu0 0.0
        %603 = vmatprep.subr.mxu0 0.0
        %604 = vmatpush1.xpose.msra.mxu0 0.0
        %605 = vmatprep.subr.mxu0 0.0
        %606 = vmatpush1.xpose.msra.mxu0 0.0
        %607 = vmatprep.subr.mxu0 0.0
        %608 = vmatpush1.xpose.msra.mxu0 0.0
        %609 = vmatprep.subr.mxu0 0.0
        %610 = vmatpush1.xpose.msra.mxu0 0.0
        %611 = vmatprep.subr.mxu0 0.0
        %612 = vmatpush1.xpose.msra.mxu0 0.0
        %613 = vmatprep.subr.mxu0 0.0
        %614 = vmatpush1.xpose.msra.mxu0 0.0
        %615 = vmatprep.subr.mxu0 0.0
        %616 = vmatpush1.xpose.msra.mxu0 0.0
        %617 = vmatprep.subr.mxu0 0.0
        %618 = vmatpush1.xpose.msra.mxu0 0.0
        %619 = vmatprep.subr.mxu0 0.0
        %620 = vmatpush1.xpose.msra.mxu0 0.0
        %621 = vmatprep.subr.mxu0 0.0
        %622 = vmatpush1.xpose.msra.mxu0 0.0
        %623 = vmatprep.subr.mxu0 0.0
        %624 = vmatpush1.xpose.msra.mxu0 0.0
        %625 = vmatprep.subr.mxu0 0.0
        %626 = vmatpush1.xpose.msra.mxu0 0.0
        %627 = vmatprep.subr.mxu0 0.0
        %628 = vmatpush1.xpose.msra.mxu0 0.0
        %629 = vmatprep.subr.mxu0 0.0
        %630 = vmatpush1.xpose.msra.mxu0 0.0
        %631 = vmatprep.subr.mxu0 0.0
        %632 = vmatpush1.xpose.msra.mxu0 0.0
        %633 = vmatprep.subr.mxu0 0.0
        %634 = vmatpush1.xpose.msra.mxu0 0.0
        %635 = vmatprep.mubr.f32.mxu0 0.0
        %636 = vmatmul.mubr.f32.gmra.mrb[0].mxu0 %v560
        %v637 = vpop.f32.mrb[0].mxu0
        %v638 = vadd.f32 0.0, %v637
        %v639 = vpop.f32.mrb[0].mxu0
        %640 = vmatprep.mubr.f32.mxu0 0.0
        %641 = vmatmul.mubr.f32.gmra.mrb[0].mxu0 %v563
        %v642 = vpop.f32.mrb[0].mxu0
        %v643 = vadd.f32 0.0, %v642
        %v644 = vpop.f32.mrb[0].mxu0
        %645 = vdwg.mxu0
        %v646 = vsel %vm444, %v638, -inf
        %647 = vmax.xlane.f32.xlu0 %v646
        %v648 = vpop.xlane.xlu0 %647
        %v649 = vsel %vm444, %v643, -inf
        %650 = vmax.xlane.f32.xlu0 %v649
        %v651 = vpop.xlane.xlu0 %650
        %v652 = vsub.f32 %v638, %v648
        %v653 = vsub.f32 %v643, %v651
        %v654 = vmul.f32 %v652, 1.442695
        %v655 = vpow.pop %v654
        %v656 = vmul.f32 %v653, 1.442695
        %v657 = vpow.pop %v656
        %v658 = vsel %vm444, %v655, 0.0
        %659 = vadd.xlane.f32.xlu0 %v658
        %v660 = vpop.xlane.xlu0 %659
        %v661 = vsel %vm444, %v657, 0.0
        %662 = vadd.xlane.f32.xlu0 %v661
        %v663 = vpop.xlane.xlu0 %662
        %v664 = vrcp.pop %v660
        %v665 = vmul.f32 %v655, %v664
        %v666 = vrcp.pop %v663
        %v667 = vmul.f32 %v657, %v666
        %s668 = scalar_lea.vmem %s308, 16 [#allocation4]
        %669 = vst.msk [vmem:[%s668] sm:$0xff] %vm444, %v665
        %670 = vst.msk [vmem:[%s668 + $0x8] sm:$0xff] %vm444, %v667
        %v672 = vsel %vm444, %v665, 0
        %v675 = vsel %vm444, %v667, 0
        %677 = vmatprep.subr.mxu0 0.0
        %678 = vmatpush1.msra.mxu0 %v557
        %679 = vmatprep.subr.mxu0 0.0
        %680 = vmatpush1.msra.mxu0 %v558
        %681 = vmatprep.subr.mxu0 0.0
        %682 = vmatpush1.msra.mxu0 0.0
        %683 = vmatprep.subr.mxu0 0.0
        %684 = vmatpush1.msra.mxu0 0.0
        %685 = vmatprep.subr.mxu0 0.0
        %686 = vmatpush1.msra.mxu0 0.0
        %687 = vmatprep.subr.mxu0 0.0
        %688 = vmatpush1.msra.mxu0 0.0
        %689 = vmatprep.subr.mxu0 0.0
        %690 = vmatpush1.msra.mxu0 0.0
        %691 = vmatprep.subr.mxu0 0.0
        %692 = vmatpush1.msra.mxu0 0.0
        %693 = vmatprep.subr.mxu0 0.0
        %694 = vmatpush1.msra.mxu0 0.0
        %695 = vmatprep.subr.mxu0 0.0
        %696 = vmatpush1.msra.mxu0 0.0
        %697 = vmatprep.subr.mxu0 0.0
        %698 = vmatpush1.msra.mxu0 0.0
        %699 = vmatprep.subr.mxu0 0.0
        %700 = vmatpush1.msra.mxu0 0.0
        %701 = vmatprep.subr.mxu0 0.0
        %702 = vmatpush1.msra.mxu0 0.0
        %703 = vmatprep.subr.mxu0 0.0
        %704 = vmatpush1.msra.mxu0 0.0
        %705 = vmatprep.subr.mxu0 0.0
        %706 = vmatpush1.msra.mxu0 0.0
        %707 = vmatprep.subr.mxu0 0.0
        %708 = vmatpush1.msra.mxu0 0.0
        %709 = vmatprep.subr.mxu0 0.0
        %710 = vmatpush1.msra.mxu0 0.0
        %711 = vmatprep.subr.mxu0 0.0
        %712 = vmatpush1.msra.mxu0 0.0
        %713 = vmatprep.subr.mxu0 0.0
        %714 = vmatpush1.msra.mxu0 0.0
        %715 = vmatprep.subr.mxu0 0.0
        %716 = vmatpush1.msra.mxu0 0.0
        %717 = vmatprep.subr.mxu0 0.0
        %718 = vmatpush1.msra.mxu0 0.0
        %719 = vmatprep.subr.mxu0 0.0
        %720 = vmatpush1.msra.mxu0 0.0
        %721 = vmatprep.subr.mxu0 0.0
        %722 = vmatpush1.msra.mxu0 0.0
        %723 = vmatprep.subr.mxu0 0.0
        %724 = vmatpush1.msra.mxu0 0.0
        %725 = vmatprep.subr.mxu0 0.0
        %726 = vmatpush1.msra.mxu0 0.0
        %727 = vmatprep.subr.mxu0 0.0
        %728 = vmatpush1.msra.mxu0 0.0
        %729 = vmatprep.subr.mxu0 0.0
        %730 = vmatpush1.msra.mxu0 0.0
        %731 = vmatprep.subr.mxu0 0.0
        %732 = vmatpush1.msra.mxu0 0.0
        %733 = vmatprep.subr.mxu0 0.0
        %734 = vmatpush1.msra.mxu0 0.0
        %735 = vmatprep.subr.mxu0 0.0
        %736 = vmatpush1.msra.mxu0 0.0
        %737 = vmatprep.subr.mxu0 0.0
        %738 = vmatpush1.msra.mxu0 0.0
        %739 = vmatprep.subr.mxu0 0.0
        %740 = vmatpush1.msra.mxu0 0.0
        %741 = vmatprep.mubr.f32.mxu0 0.0
        %742 = vmatmul.mubr.f32.gmra.mrb[0].mxu0 %v672
        %v743 = vpop.f32.mrb[0].mxu0
        %v744 = vadd.f32 0.0, %v743
        %v745 = vpop.f32.mrb[0].mxu0
        %746 = vmatprep.mubr.f32.mxu0 0.0
        %747 = vmatmul.mubr.f32.gmra.mrb[0].mxu0 %v675
        %v748 = vpop.f32.mrb[0].mxu0
        %v749 = vadd.f32 0.0, %v748
        %v750 = vpop.f32.mrb[0].mxu0
        %751 = vdwg.mxu0
        %s752 = scalar_lea.vmem %s322, 32
        %v753 = vld [vmem:[%s752] sm:$0xff]
        %v754 = vld [vmem:[%s752 + $0x8] sm:$0xff]
        %s755 = scalar_lea.vmem %s334, 32
        %v756 = vld [vmem:[%s755] sm:$0xff]
        %v757 = vld [vmem:[%s755 + $0x8] sm:$0xff]
        %s758 = scalar_lea.vmem %s345, 32
        %v759 = vld [vmem:[%s758] sm:$0xff]
        %v760 = vld [vmem:[%s758 + $0x8] sm:$0xff]
        %v762 = vsel %vm356, %v753, 0
        %v765 = vsel %vm356, %v754, 0
        %v768 = vsel %vm356, %v756, 0
        %v771 = vsel %vm356, %v757, 0
        %773 = vmatprep.subr.mxu0 0.0
        %774 = vmatpush1.xpose.msra.mxu0 %v768
        %775 = vmatprep.subr.mxu0 0.0
        %776 = vmatpush1.xpose.msra.mxu0 %v771
        %777 = vmatprep.subr.mxu0 0.0
        %778 = vmatpush1.xpose.msra.mxu0 0.0
        %779 = vmatprep.subr.mxu0 0.0
        %780 = vmatpush1.xpose.msra.mxu0 0.0
        %781 = vmatprep.subr.mxu0 0.0
        %782 = vmatpush1.xpose.msra.mxu0 0.0
        %783 = vmatprep.subr.mxu0 0.0
        %784 = vmatpush1.xpose.msra.mxu0 0.0
        %785 = vmatprep.subr.mxu0 0.0
        %786 = vmatpush1.xpose.msra.mxu0 0.0
        %787 = vmatprep.subr.mxu0 0.0
        %788 = vmatpush1.xpose.msra.mxu0 0.0
        %789 = vmatprep.subr.mxu0 0.0
        %790 = vmatpush1.xpose.msra.mxu0 0.0
        %791 = vmatprep.subr.mxu0 0.0
        %792 = vmatpush1.xpose.msra.mxu0 0.0
        %793 = vmatprep.subr.mxu0 0.0
        %794 = vmatpush1.xpose.msra.mxu0 0.0
        %795 = vmatprep.subr.mxu0 0.0
        %796 = vmatpush1.xpose.msra.mxu0 0.0
        %797 = vmatprep.subr.mxu0 0.0
        %798 = vmatpush1.xpose.msra.mxu0 0.0
        %799 = vmatprep.subr.mxu0 0.0
        %800 = vmatpush1.xpose.msra.mxu0 0.0
        %801 = vmatprep.subr.mxu0 0.0
        %802 = vmatpush1.xpose.msra.mxu0 0.0
        %803 = vmatprep.subr.mxu0 0.0
        %804 = vmatpush1.xpose.msra.mxu0 0.0
        %805 = vmatprep.subr.mxu0 0.0
        %806 = vmatpush1.xpose.msra.mxu0 0.0
        %807 = vmatprep.subr.mxu0 0.0
        %808 = vmatpush1.xpose.msra.mxu0 0.0
        %809 = vmatprep.subr.mxu0 0.0
        %810 = vmatpush1.xpose.msra.mxu0 0.0
        %811 = vmatprep.subr.mxu0 0.0
        %812 = vmatpush1.xpose.msra.mxu0 0.0
        %813 = vmatprep.subr.mxu0 0.0
        %814 = vmatpush1.xpose.msra.mxu0 0.0
        %815 = vmatprep.subr.mxu0 0.0
        %816 = vmatpush1.xpose.msra.mxu0 0.0
        %817 = vmatprep.subr.mxu0 0.0
        %818 = vmatpush1.xpose.msra.mxu0 0.0
        %819 = vmatprep.subr.mxu0 0.0
        %820 = vmatpush1.xpose.msra.mxu0 0.0
        %821 = vmatprep.subr.mxu0 0.0
        %822 = vmatpush1.xpose.msra.mxu0 0.0
        %823 = vmatprep.subr.mxu0 0.0
        %824 = vmatpush1.xpose.msra.mxu0 0.0
        %825 = vmatprep.subr.mxu0 0.0
        %826 = vmatpush1.xpose.msra.mxu0 0.0
        %827 = vmatprep.subr.mxu0 0.0
        %828 = vmatpush1.xpose.msra.mxu0 0.0
        %829 = vmatprep.subr.mxu0 0.0
        %830 = vmatpush1.xpose.msra.mxu0 0.0
        %831 = vmatprep.subr.mxu0 0.0
        %832 = vmatpush1.xpose.msra.mxu0 0.0
        %833 = vmatprep.subr.mxu0 0.0
        %834 = vmatpush1.xpose.msra.mxu0 0.0
        %835 = vmatprep.subr.mxu0 0.0
        %836 = vmatpush1.xpose.msra.mxu0 0.0
        %837 = vmatprep.mubr.f32.mxu0 0.0
        %838 = vmatmul.mubr.f32.gmra.mrb[0].mxu0 %v762
        %v839 = vpop.f32.mrb[0].mxu0
        %v840 = vadd.f32 0.0, %v839
        %v841 = vpop.f32.mrb[0].mxu0
        %842 = vmatprep.mubr.f32.mxu0 0.0
        %843 = vmatmul.mubr.f32.gmra.mrb[0].mxu0 %v765
        %v844 = vpop.f32.mrb[0].mxu0
        %v845 = vadd.f32 0.0, %v844
        %v846 = vpop.f32.mrb[0].mxu0
        %847 = vdwg.mxu0
        %v848 = vsel %vm444, %v840, -inf
        %849 = vmax.xlane.f32.xlu0 %v848
        %v850 = vpop.xlane.xlu0 %849
        %v851 = vsel %vm444, %v845, -inf
        %852 = vmax.xlane.f32.xlu0 %v851
        %v853 = vpop.xlane.xlu0 %852
        %v854 = vsub.f32 %v840, %v850
        %v855 = vsub.f32 %v845, %v853
        %v856 = vmul.f32 %v854, 1.442695
        %v857 = vpow.pop %v856
        %v858 = vmul.f32 %v855, 1.442695
        %v859 = vpow.pop %v858
        %v860 = vsel %vm444, %v857, 0.0
        %861 = vadd.xlane.f32.xlu0 %v860
        %v862 = vpop.xlane.xlu0 %861
        %v863 = vsel %vm444, %v859, 0.0
        %864 = vadd.xlane.f32.xlu0 %v863
        %v865 = vpop.xlane.xlu0 %864
        %v866 = vrcp.pop %v862
        %v867 = vmul.f32 %v857, %v866
        %v868 = vrcp.pop %v865
        %v869 = vmul.f32 %v859, %v868
        %s870 = scalar_lea.vmem %s308, 32 [#allocation4]
        %871 = vst.msk [vmem:[%s870] sm:$0xff] %vm444, %v867
        %872 = vst.msk [vmem:[%s870 + $0x8] sm:$0xff] %vm444, %v869
        %v874 = vsel %vm444, %v867, 0
        %v877 = vsel %vm444, %v869, 0
        %879 = vmatprep.subr.mxu0 0.0
        %880 = vmatpush1.msra.mxu0 %v759
        %881 = vmatprep.subr.mxu0 0.0
        %882 = vmatpush1.msra.mxu0 %v760
        %883 = vmatprep.subr.mxu0 0.0
        %884 = vmatpush1.msra.mxu0 0.0
        %885 = vmatprep.subr.mxu0 0.0
        %886 = vmatpush1.msra.mxu0 0.0
        %887 = vmatprep.subr.mxu0 0.0
        %888 = vmatpush1.msra.mxu0 0.0
        %889 = vmatprep.subr.mxu0 0.0
        %890 = vmatpush1.msra.mxu0 0.0
        %891 = vmatprep.subr.mxu0 0.0
        %892 = vmatpush1.msra.mxu0 0.0
        %893 = vmatprep.subr.mxu0 0.0
        %894 = vmatpush1.msra.mxu0 0.0
        %895 = vmatprep.subr.mxu0 0.0
        %896 = vmatpush1.msra.mxu0 0.0
        %897 = vmatprep.subr.mxu0 0.0
        %898 = vmatpush1.msra.mxu0 0.0
        %899 = vmatprep.subr.mxu0 0.0
        %900 = vmatpush1.msra.mxu0 0.0
        %901 = vmatprep.subr.mxu0 0.0
        %902 = vmatpush1.msra.mxu0 0.0
        %903 = vmatprep.subr.mxu0 0.0
        %904 = vmatpush1.msra.mxu0 0.0
        %905 = vmatprep.subr.mxu0 0.0
        %906 = vmatpush1.msra.mxu0 0.0
        %907 = vmatprep.subr.mxu0 0.0
        %908 = vmatpush1.msra.mxu0 0.0
        %909 = vmatprep.subr.mxu0 0.0
        %910 = vmatpush1.msra.mxu0 0.0
        %911 = vmatprep.subr.mxu0 0.0
        %912 = vmatpush1.msra.mxu0 0.0
        %913 = vmatprep.subr.mxu0 0.0
        %914 = vmatpush1.msra.mxu0 0.0
        %915 = vmatprep.subr.mxu0 0.0
        %916 = vmatpush1.msra.mxu0 0.0
        %917 = vmatprep.subr.mxu0 0.0
        %918 = vmatpush1.msra.mxu0 0.0
        %919 = vmatprep.subr.mxu0 0.0
        %920 = vmatpush1.msra.mxu0 0.0
        %921 = vmatprep.subr.mxu0 0.0
        %922 = vmatpush1.msra.mxu0 0.0
        %923 = vmatprep.subr.mxu0 0.0
        %924 = vmatpush1.msra.mxu0 0.0
        %925 = vmatprep.subr.mxu0 0.0
        %926 = vmatpush1.msra.mxu0 0.0
        %927 = vmatprep.subr.mxu0 0.0
        %928 = vmatpush1.msra.mxu0 0.0
        %929 = vmatprep.subr.mxu0 0.0
        %930 = vmatpush1.msra.mxu0 0.0
        %931 = vmatprep.subr.mxu0 0.0
        %932 = vmatpush1.msra.mxu0 0.0
        %933 = vmatprep.subr.mxu0 0.0
        %934 = vmatpush1.msra.mxu0 0.0
        %935 = vmatprep.subr.mxu0 0.0
        %936 = vmatpush1.msra.mxu0 0.0
        %937 = vmatprep.subr.mxu0 0.0
        %938 = vmatpush1.msra.mxu0 0.0
        %939 = vmatprep.subr.mxu0 0.0
        %940 = vmatpush1.msra.mxu0 0.0
        %941 = vmatprep.subr.mxu0 0.0
        %942 = vmatpush1.msra.mxu0 0.0
        %943 = vmatprep.mubr.f32.mxu0 0.0
        %944 = vmatmul.mubr.f32.gmra.mrb[0].mxu0 %v874
        %v945 = vpop.f32.mrb[0].mxu0
        %v946 = vadd.f32 0.0, %v945
        %v947 = vpop.f32.mrb[0].mxu0
        %948 = vmatprep.mubr.f32.mxu0 0.0
        %949 = vmatmul.mubr.f32.gmra.mrb[0].mxu0 %v877
        %v950 = vpop.f32.mrb[0].mxu0
        %v951 = vadd.f32 0.0, %v950
        %v952 = vpop.f32.mrb[0].mxu0
        %953 = vdwg.mxu0
        %s954 = scalar_lea.vmem %s322, 48
        %v955 = vld [vmem:[%s954] sm:$0xff]
        %v956 = vld [vmem:[%s954 + $0x8] sm:$0xff]
        %s957 = scalar_lea.vmem %s334, 48
        %v958 = vld [vmem:[%s957] sm:$0xff]
        %v959 = vld [vmem:[%s957 + $0x8] sm:$0xff]
        %s960 = scalar_lea.vmem %s345, 48
        %v961 = vld [vmem:[%s960] sm:$0xff]
        %v962 = vld [vmem:[%s960 + $0x8] sm:$0xff]
        %v964 = vsel %vm356, %v955, 0
        %v967 = vsel %vm356, %v956, 0
        %v970 = vsel %vm356, %v958, 0
        %v973 = vsel %vm356, %v959, 0
        %975 = vmatprep.subr.mxu0 0.0
        %976 = vmatpush1.xpose.msra.mxu0 %v970
        %977 = vmatprep.subr.mxu0 0.0
        %978 = vmatpush1.xpose.msra.mxu0 %v973
        %979 = vmatprep.subr.mxu0 0.0
        %980 = vmatpush1.xpose.msra.mxu0 0.0
        %981 = vmatprep.subr.mxu0 0.0
        %982 = vmatpush1.xpose.msra.mxu0 0.0
        %983 = vmatprep.subr.mxu0 0.0
        %984 = vmatpush1.xpose.msra.mxu0 0.0
        %985 = vmatprep.subr.mxu0 0.0
        %986 = vmatpush1.xpose.msra.mxu0 0.0
        %987 = vmatprep.subr.mxu0 0.0
        %988 = vmatpush1.xpose.msra.mxu0 0.0
        %989 = vmatprep.subr.mxu0 0.0
        %990 = vmatpush1.xpose.msra.mxu0 0.0
        %991 = vmatprep.subr.mxu0 0.0
        %992 = vmatpush1.xpose.msra.mxu0 0.0
        %993 = vmatprep.subr.mxu0 0.0
        %994 = vmatpush1.xpose.msra.mxu0 0.0
        %995 = vmatprep.subr.mxu0 0.0
        %996 = vmatpush1.xpose.msra.mxu0 0.0
        %997 = vmatprep.subr.mxu0 0.0
        %998 = vmatpush1.xpose.msra.mxu0 0.0
        %999 = vmatprep.subr.mxu0 0.0
        %1000 = vmatpush1.xpose.msra.mxu0 0.0
        %1001 = vmatprep.subr.mxu0 0.0
        %1002 = vmatpush1.xpose.msra.mxu0 0.0
        %1003 = vmatprep.subr.mxu0 0.0
        %1004 = vmatpush1.xpose.msra.mxu0 0.0
        %1005 = vmatprep.subr.mxu0 0.0
        %1006 = vmatpush1.xpose.msra.mxu0 0.0
        %1007 = vmatprep.subr.mxu0 0.0
        %1008 = vmatpush1.xpose.msra.mxu0 0.0
        %1009 = vmatprep.subr.mxu0 0.0
        %1010 = vmatpush1.xpose.msra.mxu0 0.0
        %1011 = vmatprep.subr.mxu0 0.0
        %1012 = vmatpush1.xpose.msra.mxu0 0.0
        %1013 = vmatprep.subr.mxu0 0.0
        %1014 = vmatpush1.xpose.msra.mxu0 0.0
        %1015 = vmatprep.subr.mxu0 0.0
        %1016 = vmatpush1.xpose.msra.mxu0 0.0
        %1017 = vmatprep.subr.mxu0 0.0
        %1018 = vmatpush1.xpose.msra.mxu0 0.0
        %1019 = vmatprep.subr.mxu0 0.0
        %1020 = vmatpush1.xpose.msra.mxu0 0.0
        %1021 = vmatprep.subr.mxu0 0.0
        %1022 = vmatpush1.xpose.msra.mxu0 0.0
        %1023 = vmatprep.subr.mxu0 0.0
        %1024 = vmatpush1.xpose.msra.mxu0 0.0
        %1025 = vmatprep.subr.mxu0 0.0
        %1026 = vmatpush1.xpose.msra.mxu0 0.0
        %1027 = vmatprep.subr.mxu0 0.0
        %1028 = vmatpush1.xpose.msra.mxu0 0.0
        %1029 = vmatprep.subr.mxu0 0.0
        %1030 = vmatpush1.xpose.msra.mxu0 0.0
        %1031 = vmatprep.subr.mxu0 0.0
        %1032 = vmatpush1.xpose.msra.mxu0 0.0
        %1033 = vmatprep.subr.mxu0 0.0
        %1034 = vmatpush1.xpose.msra.mxu0 0.0
        %1035 = vmatprep.subr.mxu0 0.0
        %1036 = vmatpush1.xpose.msra.mxu0 0.0
        %1037 = vmatprep.subr.mxu0 0.0
        %1038 = vmatpush1.xpose.msra.mxu0 0.0
        %1039 = vmatprep.mubr.f32.mxu0 0.0
        %1040 = vmatmul.mubr.f32.gmra.mrb[0].mxu0 %v964
        %v1041 = vpop.f32.mrb[0].mxu0
        %v1042 = vadd.f32 0.0, %v1041
        %v1043 = vpop.f32.mrb[0].mxu0
        %1044 = vmatprep.mubr.f32.mxu0 0.0
        %1045 = vmatmul.mubr.f32.gmra.mrb[0].mxu0 %v967
        %v1046 = vpop.f32.mrb[0].mxu0
        %v1047 = vadd.f32 0.0, %v1046
        %v1048 = vpop.f32.mrb[0].mxu0
        %1049 = vdwg.mxu0
        %v1050 = vsel %vm444, %v1042, -inf
        %1051 = vmax.xlane.f32.xlu0 %v1050
        %v1052 = vpop.xlane.xlu0 %1051
        %v1053 = vsel %vm444, %v1047, -inf
        %1054 = vmax.xlane.f32.xlu0 %v1053
        %v1055 = vpop.xlane.xlu0 %1054
        %v1056 = vsub.f32 %v1042, %v1052
        %v1057 = vsub.f32 %v1047, %v1055
        %v1058 = vmul.f32 %v1056, 1.442695
        %v1059 = vpow.pop %v1058
        %v1060 = vmul.f32 %v1057, 1.442695
        %v1061 = vpow.pop %v1060
        %v1062 = vsel %vm444, %v1059, 0.0
        %1063 = vadd.xlane.f32.xlu0 %v1062
        %v1064 = vpop.xlane.xlu0 %1063
        %v1065 = vsel %vm444, %v1061, 0.0
        %1066 = vadd.xlane.f32.xlu0 %v1065
        %v1067 = vpop.xlane.xlu0 %1066
        %v1068 = vrcp.pop %v1064
        %v1069 = vmul.f32 %v1059, %v1068
        %v1070 = vrcp.pop %v1067
        %v1071 = vmul.f32 %v1061, %v1070
        %s1072 = scalar_lea.vmem %s308, 48 [#allocation4]
        %1073 = vst.msk [vmem:[%s1072] sm:$0xff] %vm444, %v1069
        %1074 = vst.msk [vmem:[%s1072 + $0x8] sm:$0xff] %vm444, %v1071
        %v1076 = vsel %vm444, %v1069, 0
        %v1079 = vsel %vm444, %v1071, 0
        %1081 = vmatprep.subr.mxu0 0.0
        %1082 = vmatpush1.msra.mxu0 %v961
        %1083 = vmatprep.subr.mxu0 0.0
        %1084 = vmatpush1.msra.mxu0 %v962
        %1085 = vmatprep.subr.mxu0 0.0
        %1086 = vmatpush1.msra.mxu0 0.0
        %1087 = vmatprep.subr.mxu0 0.0
        %1088 = vmatpush1.msra.mxu0 0.0
        %1089 = vmatprep.subr.mxu0 0.0
        %1090 = vmatpush1.msra.mxu0 0.0
        %1091 = vmatprep.subr.mxu0 0.0
        %1092 = vmatpush1.msra.mxu0 0.0
        %1093 = vmatprep.subr.mxu0 0.0
        %1094 = vmatpush1.msra.mxu0 0.0
        %1095 = vmatprep.subr.mxu0 0.0
        %1096 = vmatpush1.msra.mxu0 0.0
        %1097 = vmatprep.subr.mxu0 0.0
        %1098 = vmatpush1.msra.mxu0 0.0
        %1099 = vmatprep.subr.mxu0 0.0
        %1100 = vmatpush1.msra.mxu0 0.0
        %1101 = vmatprep.subr.mxu0 0.0
        %1102 = vmatpush1.msra.mxu0 0.0
        %1103 = vmatprep.subr.mxu0 0.0
        %1104 = vmatpush1.msra.mxu0 0.0
        %1105 = vmatprep.subr.mxu0 0.0
        %1106 = vmatpush1.msra.mxu0 0.0
        %1107 = vmatprep.subr.mxu0 0.0
        %1108 = vmatpush1.msra.mxu0 0.0
        %1109 = vmatprep.subr.mxu0 0.0
        %1110 = vmatpush1.msra.mxu0 0.0
        %1111 = vmatprep.subr.mxu0 0.0
        %1112 = vmatpush1.msra.mxu0 0.0
        %1113 = vmatprep.subr.mxu0 0.0
        %1114 = vmatpush1.msra.mxu0 0.0
        %1115 = vmatprep.subr.mxu0 0.0
        %1116 = vmatpush1.msra.mxu0 0.0
        %1117 = vmatprep.subr.mxu0 0.0
        %1118 = vmatpush1.msra.mxu0 0.0
        %1119 = vmatprep.subr.mxu0 0.0
        %1120 = vmatpush1.msra.mxu0 0.0
        %1121 = vmatprep.subr.mxu0 0.0
        %1122 = vmatpush1.msra.mxu0 0.0
        %1123 = vmatprep.subr.mxu0 0.0
        %1124 = vmatpush1.msra.mxu0 0.0
        %1125 = vmatprep.subr.mxu0 0.0
        %1126 = vmatpush1.msra.mxu0 0.0
        %1127 = vmatprep.subr.mxu0 0.0
        %1128 = vmatpush1.msra.mxu0 0.0
        %1129 = vmatprep.subr.mxu0 0.0
        %1130 = vmatpush1.msra.mxu0 0.0
        %1131 = vmatprep.subr.mxu0 0.0
        %1132 = vmatpush1.msra.mxu0 0.0
        %1133 = vmatprep.subr.mxu0 0.0
        %1134 = vmatpush1.msra.mxu0 0.0
        %1135 = vmatprep.subr.mxu0 0.0
        %1136 = vmatpush1.msra.mxu0 0.0
        %1137 = vmatprep.subr.mxu0 0.0
        %1138 = vmatpush1.msra.mxu0 0.0
        %1139 = vmatprep.subr.mxu0 0.0
        %1140 = vmatpush1.msra.mxu0 0.0
        %1141 = vmatprep.subr.mxu0 0.0
        %1142 = vmatpush1.msra.mxu0 0.0
        %1143 = vmatprep.subr.mxu0 0.0
        %1144 = vmatpush1.msra.mxu0 0.0
        %1145 = vmatprep.mubr.f32.mxu0 0.0
        %1146 = vmatmul.mubr.f32.gmra.mrb[0].mxu0 %v1076
        %v1147 = vpop.f32.mrb[0].mxu0
        %v1148 = vadd.f32 0.0, %v1147
        %v1149 = vpop.f32.mrb[0].mxu0
        %1150 = vmatprep.mubr.f32.mxu0 0.0
        %1151 = vmatmul.mubr.f32.gmra.mrb[0].mxu0 %v1079
        %v1152 = vpop.f32.mrb[0].mxu0
        %v1153 = vadd.f32 0.0, %v1152
        %v1154 = vpop.f32.mrb[0].mxu0
        %1155 = vdwg.mxu0
        %1158 = vrot.lane.b32.xlu0 %v744, 8
        %v1159 = vpop.permute.xlu0 %1158
        %1160 = vrot.lane.b32.xlu0 %v749, 8
        %v1161 = vpop.permute.xlu0 %1160
        %1166 = vrot.lane.b32.xlu0 %v946, 16
        %v1167 = vpop.permute.xlu0 %1166
        %1168 = vrot.lane.b32.xlu0 %v951, 16
        %v1169 = vpop.permute.xlu0 %1168
        %1174 = vrot.lane.b32.xlu0 %v1148, 24
        %v1175 = vpop.permute.xlu0 %1174
        %1176 = vrot.lane.b32.xlu0 %v1153, 24
        %v1177 = vpop.permute.xlu0 %1176
        %v1180 = vsel %vm356, %v542, %v1159
        %v1181 = vsel %vm356, %v547, %v1161
        %v1182 = vsel %vm444, %v1180, %v1167
        %v1183 = vsel %vm444, %v1181, %v1169
        %vm1184 = vcmask 195584
        %v1185 = vsel %vm1184, %v1182, %v1175
        %v1186 = vsel %vm1184, %v1183, %v1177
        %vm1187 = vcmask 261120
        %1188 = vst.msk [vmem:[%s301] sm:$0xff] %vm1187, %v1185
        %1189 = vst.msk [vmem:[%s301 + $0x8] sm:$0xff] %vm1187, %v1186
        %s1190 = sand.u32 %s139, 1
        %s1191 = scalar_lea.sflag [#allocation3], %s1190
        %s1192 = sand.u32 %s139, 1
        %s1193 = smul.addr %s1192, 16
        %s1194 = scalar_lea.vmem [#allocation2], %s1193
        %s1195 = sand.u32 %s169, 1
        %s1196 = scalar_lea.sflag [#allocation5], %s1195
        %s1197 = sand.u32 %s169, 1
        %s1198 = smul.addr %s1197, 64
        %s1199 = scalar_lea.vmem [#allocation4], %s1198
        // Predicated region
        $region33: #{tpu_custom_call.1} parent=31 // pred_check
          %p1200 = pneg %p149
        $region34: #{tpu_custom_call.1} parent=31 // pred_check_branch
          %1202 = sbr.rel (%p1200) target = $region36
        $region35: #{tpu_custom_call.1} parent=31 // pred_region
          %s1203 = smul.u32 2, %s29
          %s1205 = ssub.s32 256, 256
          %1206 = vsyncadd %s1191, %s1205
          %s1207 = sadd.s32 %s28, %s1203
          %s1208 = smul.addr %s27, 2
          %s1209 = sadd.s32 %s1207, %s1208
          %s1210 = smul.addr %s1209, 128
          %s1211 = scalar_lea.hbm %s3, %s1210
          %s1212 = sshll.u32 %s1194, 4
          %s1213 = int_to_ptr.vmem [resolvable:$true] %s1212
          %1218 = dma.vmem_to_hbm [thread:$0]  %s1213, 256, %s1211, %s1191, 128, 128, 8
        $region36: #{tpu_custom_call.1} parent=31 // pred_fallthru
          _
        // Predicated region
        $region37: #{tpu_custom_call.1} parent=31 // pred_check
          %p1219 = pneg %p179
        $region38: #{tpu_custom_call.1} parent=31 // pred_check_branch
          %1221 = sbr.rel (%p1219) target = $region40
        $region39: #{tpu_custom_call.1} parent=31 // pred_region
          #allocation7 [shape = 'u32[6]{0}', space=smem, size = 0x18, scoped, tag = 'DMA stride descriptor']
          %s1222 = smul.u32 4, %s28
          %s1223 = smul.u32 2, %s29
          %s1225 = ssub.s32 1024, 1024
          %1226 = vsyncadd %s1196, %s1225
          %s1227 = smul.addr %s27, 2
          %s1228 = sadd.s32 %s1223, %s1227
          %s1229 = smul.addr %s1222, 4
          %s1230 = sadd.s32 %s1228, %s1229
          %s1231 = smul.addr %s1230, 128
          %s1232 = scalar_lea.hbm %s4, %s1231
          %s1234 = sshll.u32 1, 14
          %s1235 = sxor.u32 4294967295, %s1234
          %s1238 = sshll.u32 7, 18
          %s1239 = sxor.u32 4294967295, %s1238
          %s1240 = sand.u32 0, %s1239
          %s1242 = sor.u32 %s1240, 0
          %s1244 = sshll.u32 3, 24
          %s1245 = sxor.u32 4294967295, %s1244
          %s1246 = sand.u32 %s1242, %s1245
          %s1248 = sor.u32 %s1246, 0
          %s1249 = sshll.u32 %s1199, 4
          %s1250 = int_to_ptr.vmem [resolvable:$true] %s1249
          %1256 = sst [smem:[#allocation7]] 256
          %s1257 = scalar_lea.smem [#allocation7], 1
          %1258 = sst [smem:[%s1257]] 512
          %s1259 = scalar_lea.smem [#allocation7], 2
          %1260 = sst [smem:[%s1259]] 2
          %s1261 = scalar_lea.smem [#allocation7], 3
          %1262 = sst [smem:[%s1261]] 128
          %s1263 = scalar_lea.smem [#allocation7], 4
          %1264 = sst [smem:[%s1263]] 128
          %s1265 = scalar_lea.smem [#allocation7], 5
          %1266 = sst [smem:[%s1265]] 8
          %1268 = dma.general %s1250, 1024, %s1232, %s1196, [#allocation6], [#allocation7], %s1248, 0
        $region40: #{tpu_custom_call.1} parent=31 // pred_fallthru
          _
      $region32: #{tpu_custom_call.1} parent=5 // pred_fallthru
        _
      %p1269 = scmp.le.s32.totalorder 2, %s17
      // Predicated region
      $region41: #{tpu_custom_call.1} parent=5 // pred_check
        %p1270 = pneg %p1269
      $region42: #{tpu_custom_call.1} parent=5 // pred_check_branch
        %1272 = sbr.rel (%p1270) target = $region44
      $region43: #{tpu_custom_call.1} parent=5 // pred_region
        %s1273 = ssub.s32 %s17, 2
        // Predicated region
        $region45: #{tpu_custom_call.1} parent=43 // pred_check
          %p1274 = pneg %p155
        $region46: #{tpu_custom_call.1} parent=43 // pred_check_branch
          %1276 = sbr.rel (%p1274) target = $region48
        $region47: #{tpu_custom_call.1} parent=43 // pred_region
          %s1277 = sand.u32 %s140, 1
          %s1278 = scalar_lea.sflag [#allocation3], %s1277
          %s1279 = sand.u32 %s140, 1
          %s1280 = smul.addr %s1279, 16
          %s1281 = scalar_lea.vmem [#allocation2], %s1280
          %1282 = dma.done %s1278, 256
        $region48: #{tpu_custom_call.1} parent=43 // pred_fallthru
          _
        // Predicated region
        $region49: #{tpu_custom_call.1} parent=43 // pred_check
          %p1283 = pneg %p185
        $region50: #{tpu_custom_call.1} parent=43 // pred_check_branch
          %1285 = sbr.rel (%p1283) target = $region52
        $region51: #{tpu_custom_call.1} parent=43 // pred_region
          %s1286 = sand.u32 %s170, 1
          %s1287 = scalar_lea.sflag [#allocation5], %s1286
          %s1288 = sand.u32 %s170, 1
          %s1289 = smul.addr %s1288, 64
          %s1290 = scalar_lea.vmem [#allocation4], %s1289
          %1291 = dma.done %s1287, 1024
        $region52: #{tpu_custom_call.1} parent=43 // pred_fallthru
          _
      $region44: #{tpu_custom_call.1} parent=5 // pred_fallthru
        _
    $region6: #{tpu_custom_call.1} parent=1 // loop_footer
      %s21 = sadd.s32 1, %s17
    $region7: #{tpu_custom_call.1} parent=1 // loop_footer_branch
      %16 = sbr.rel target = $region3
    $region8: #{tpu_custom_call.1} parent=1 // loop_exit
      _
    %1292 = vsyncpa [#allocation3], 1
    %s1293 = scalar_lea.sflag [#allocation3], 1
    %1294 = vsyncpa %s1293, 1
    %1295 = vsyncpa [#allocation5], 1
    %s1296 = scalar_lea.sflag [#allocation5], 1
    %1297 = vsyncpa %s1296, 1

</llo_original>
